<compile_context>
chip_gen: v7x
topology: tpu7x:2x2x1
jax: 0.10.0
libtpu: 0.0.40
codegen_flags: <defaults>
</compile_context>

<pallas_src>
import functools

import jax
import jax.numpy as jnp
from jax.experimental import pallas as pl
from jax.experimental.pallas import tpu as pltpu

LANE = 128
# Above the 16 MiB (v5e) / 32 MiB (v6e,v7x) scoped defaults, below v7x's 64 MiB.
_VMEM_LIMIT = 48 * 1024 * 1024


def _round_up(n, m=LANE):
    return ((n + m - 1) // m) * m


def _pad_dim(n):
    """Pad a matmul dim: 256-aligned when cheap (v6e/v7x MXU is 256 wide/deep)."""
    p128, p256 = _round_up(n, 128), _round_up(n, 256)
    return p256 if p256 <= int(p128 * 1.15) else p128


def _gelu(x):
    # TODO(synk): PyTorch nn.GELU default is erf; tanh approx (EUP-friendly,
    # ~1e-3 max abs deviation) is used here.
    c = jnp.asarray(0.7978845608028654, x.dtype)  # sqrt(2/pi)
    return 0.5 * x * (1.0 + jnp.tanh(c * (x + 0.044715 * x * x * x)))


# ----------------------------------------------------------------------------
# Kernel 1: per-branch fused Conv1d (folded-tap matmul) + GELU + running
#           global max-pool + embedding Linear
# ----------------------------------------------------------------------------
def branch_conv_embed_kernel(lout_ref, p_ref, cw_ref, cb_ref, ew_ref, eb_ref,
                             o_ref, m_ref, *, tl):
    """Grid = (branch, batch_tile, L_tile["arbitrary"]).

    p_ref : (TB, TL, K*F)   bf16 im2col patches (taps folded into lane dim)
    cw_ref: (K*F, Kp)       bf16 packed conv weights
    cb_ref: (1, Kp)         f32 conv bias
    ew_ref: (Kp, Ep)        bf16 embedding Linear
    eb_ref: (1, Ep)         f32 embedding bias
    o_ref : (TB, Ep)        this branch's lane-offset slice of the concat out
    m_ref : (TB, Kp)        f32 running max scratch (carried across L tiles)
    """
    c = pl.program_id(0)
    l = pl.program_id(2)

    @pl.when(l == 0)
    def _():
        m_ref[...] = jnp.full_like(m_ref, -1e30)

    n_valid = lout_ref[c]                       # true conv output length
    base = l * tl

    # Skip compute for L tiles fully beyond this branch's valid conv range.
    @pl.when(base < n_valid)
    def _():
        TB, TL, KF = p_ref.shape
        Kp = cw_ref.shape[-1]
        # One bf16 matmul with M = TB*TL rows (taps folded into contraction).
        p = p_ref[...].reshape(TB * TL, KF)
        s = jnp.dot(p, cw_ref[...],
                    preferred_element_type=jnp.float32) + cb_ref[...]
        y = _gelu(s).reshape(TB, TL, Kp)
        # Mask conv positions past n_valid AFTER GELU (GELU(0)!=min), so the
        # max-pool only sees true activations.
        pos = base + jax.lax.broadcasted_iota(jnp.int32, (1, TL, 1), 1)
        y = jnp.where(pos < n_valid, y, -1e30)
        m_ref[...] = jnp.maximum(m_ref[...], jnp.max(y, axis=1))

    @pl.when(l == pl.num_programs(2) - 1)
    def _():
        h = m_ref[...].astype(ew_ref.dtype)     # bf16 MXU operand
        emb = jnp.dot(h, ew_ref[...],
                      preferred_element_type=jnp.float32) + eb_ref[...]
        o_ref[...] = emb.astype(o_ref.dtype)


def branch_conv_embed(lout, p_stk, conv_w, conv_b, emb_w, emb_b, *, tb, tl):
    n_inputs, b_pad, lp, kf = p_stk.shape
    kp = conv_w.shape[-1]
    ep = emb_w.shape[-1]
    grid = (n_inputs, b_pad // tb, lp // tl)

    grid_spec = pltpu.PrefetchScalarGridSpec(
        num_scalar_prefetch=1,                  # lout -> SMEM
        grid=grid,
        in_specs=[
            pl.BlockSpec((None, tb, tl, kf), lambda c, b, l, lo: (c, b, l, 0)),
            pl.BlockSpec((None, kf, kp),     lambda c, b, l, lo: (c, 0, 0)),
            pl.BlockSpec((None, 1, kp),      lambda c, b, l, lo: (c, 0, 0)),
            pl.BlockSpec((None, kp, ep),     lambda c, b, l, lo: (c, 0, 0)),
            pl.BlockSpec((None, 1, ep),      lambda c, b, l, lo: (c, 0, 0)),
        ],
        # each branch writes its own lane-offset block of the concat buffer
        out_specs=pl.BlockSpec((tb, ep), lambda c, b, l, lo: (b, c)),
        scratch_shapes=[pltpu.VMEM((tb, kp), jnp.float32)],
    )
    return pl.pallas_call(
        functools.partial(branch_conv_embed_kernel, tl=tl),
        out_shape=jax.ShapeDtypeStruct((b_pad, n_inputs * ep), jnp.bfloat16),
        grid_spec=grid_spec,
        compiler_params=pltpu.CompilerParams(
            dimension_semantics=("parallel", "parallel", "arbitrary"),
            vmem_limit_bytes=_VMEM_LIMIT),
    )(lout, p_stk, conv_w, conv_b, emb_w, emb_b)


# ----------------------------------------------------------------------------
# Kernel 2: fused combine-MLP (Res_FullyConnect) + classifier dense chain
# ----------------------------------------------------------------------------
def dense_chain_kernel(*refs, acts):
    """refs = (x_ref, w0, b0, w1, b1, ..., o_ref); bf16 weights resident in
    VMEM across batch tiles; f32 accumulation; acts[i]=True -> GELU."""
    x_ref = refs[0]
    o_ref = refs[-1]
    n = len(acts)
    h = x_ref[...]                              # bf16
    for i, act in enumerate(acts):
        w = refs[1 + 2 * i][...]                # bf16
        b = refs[2 + 2 * i][...]                # f32
        z = jnp.dot(h, w, preferred_element_type=jnp.float32) + b
        if act:
            z = _gelu(z)
        h = z.astype(w.dtype) if i + 1 < n else z   # keep last layer f32
    o_ref[...] = h.astype(o_ref.dtype)


def dense_chain(x, chain_w, chain_b, chain_act, *, tb):
    b_pad, d0 = x.shape
    n_out = chain_w[-1].shape[1]
    flat = [x]
    in_specs = [pl.BlockSpec((tb, d0), lambda b: (b, 0))]
    for w, b in zip(chain_w, chain_b):
        flat += [w, b]
        in_specs += [pl.BlockSpec(w.shape, lambda b: (0, 0)),   # resident
                     pl.BlockSpec(b.shape, lambda b: (0, 0))]
    return pl.pallas_call(
        functools.partial(dense_chain_kernel, acts=tuple(chain_act)),
        out_shape=jax.ShapeDtypeStruct((b_pad, n_out), jnp.float32),
        grid=(b_pad // tb,),
        in_specs=in_specs,
        out_specs=pl.BlockSpec((tb, n_out), lambda b: (b, 0)),
        compiler_params=pltpu.CompilerParams(
            dimension_semantics=("parallel",),
            vmem_limit_bytes=_VMEM_LIMIT),
    )(*flat)


# ----------------------------------------------------------------------------
# Parameter init (deterministic, synthetic), bf16 weights, lane/MXU padding
# ----------------------------------------------------------------------------
def init_params(key, *, n_inputs, n_features, ksize, n_kernels, cnn_embedding,
                n_combine_layers, combine_widening, n_classes):
    KF = ksize * n_features
    Kp = _round_up(n_kernels)
    Ep = _round_up(cnn_embedding)
    currdim = n_inputs * cnn_embedding
    hdim = int(currdim * combine_widening)
    dims = [currdim] + [hdim] * max(n_combine_layers - 1, 0) \
        + ([currdim] if n_combine_layers > 0 else [])

    keys = jax.random.split(key, 4 * n_inputs + 2 * n_combine_layers + 2)
    ki = iter(range(len(keys)))

    def lin(kw, kb, fan_in, fan_out):
        s = 1.0 / (fan_in ** 0.5)
        w = jax.random.normal(kw, (fan_in, fan_out), jnp.float32) * s
        b = jax.random.normal(kb, (1, fan_out), jnp.float32) * s
        return w, b

    conv_ws, conv_bs, emb_ws, emb_bs = [], [], [], []
    for _ in range(n_inputs):
        # Packed conv layout: w_packed[k*Cin + cin, cout] == torch W[cout, cin, k]
        # (tap-major rows), matching the wrapper's im2col column ordering.
        cw, cb = lin(keys[next(ki)], keys[next(ki)], KF, n_kernels)
        cw = jnp.pad(cw, ((0, 0), (0, Kp - n_kernels))).astype(jnp.bfloat16)
        cb = jnp.pad(cb, ((0, 0), (0, Kp - n_kernels)))
        ew, eb = lin(keys[next(ki)], keys[next(ki)], n_kernels, cnn_embedding)
        ew = jnp.pad(ew, ((0, Kp - n_kernels),
                          (0, Ep - cnn_embedding))).astype(jnp.bfloat16)
        eb = jnp.pad(eb, ((0, 0), (0, Ep - cnn_embedding)))
        conv_ws.append(cw); conv_bs.append(cb); emb_ws.append(ew); emb_bs.append(eb)

    params = {
        "ksize": ksize, "n_classes": n_classes,
        "conv_w": jnp.stack(conv_ws),   # (n_inputs, K*F, Kp) bf16
        "conv_b": jnp.stack(conv_bs),   # (n_inputs, 1, Kp)   f32
        "emb_w": jnp.stack(emb_ws),     # (n_inputs, Kp, Ep)  bf16
        "emb_b": jnp.stack(emb_bs),     # (n_inputs, 1, Ep)   f32
    }

    # Combine-MLP + classifier as one padded dense chain (bf16 weights).
    chain_w, chain_b, chain_act = [], [], []
    for lyr in range(n_combine_layers):
        w, b = lin(keys[next(ki)], keys[next(ki)], dims[lyr], dims[lyr + 1])
        dout_p = _pad_dim(dims[lyr + 1])
        if lyr == 0:
            # first layer consumes the branch-block padded concat layout
            w = w.reshape(n_inputs, cnn_embedding, dims[1])
            w = jnp.pad(w, ((0, 0), (0, Ep - cnn_embedding),
                            (0, dout_p - dims[1])))
            w = w.reshape(n_inputs * Ep, dout_p)
        else:
            w = jnp.pad(w, ((0, _pad_dim(dims[lyr]) - dims[lyr]),
                            (0, dout_p - dims[lyr + 1])))
        b = jnp.pad(b, ((0, 0), (0, dout_p - dims[lyr + 1])))
        chain_w.append(w.astype(jnp.bfloat16)); chain_b.append(b)
        chain_act.append(True)

    # classifier (outclass='Linear' -> no activation)
    Np = _pad_dim(n_classes)
    cls_in = dims[-1] if n_combine_layers > 0 else currdim
    cw, cb = lin(keys[next(ki)], keys[next(ki)], cls_in, n_classes)
    if n_combine_layers > 0:
        cw = jnp.pad(cw, ((0, _pad_dim(cls_in) - cls_in), (0, Np - n_classes)))
    else:
        cw = cw.reshape(n_inputs, cnn_embedding, n_classes)
        cw = jnp.pad(cw, ((0, 0), (0, Ep - cnn_embedding), (0, Np - n_classes)))
        cw = cw.reshape(n_inputs * Ep, Np)
    cb = jnp.pad(cb, ((0, 0), (0, Np - n_classes)))
    chain_w.append(cw.astype(jnp.bfloat16)); chain_b.append(cb)
    chain_act.append(False)

    params["chain_w"] = chain_w
    params["chain_b"] = chain_b
    params["chain_act"] = tuple(chain_act)
    return params


# ----------------------------------------------------------------------------
# Forward pass (mirrors combined_network.forward with mask=None, location='None')
# ----------------------------------------------------------------------------
def combined_network_forward(params, xs):
    ksize = params["ksize"]
    n_classes = params["n_classes"]
    B = xs[0].shape[0]
    for x in xs:
        # torch Conv1d would also fail on sequences shorter than the kernel
        assert x.shape[2] >= ksize, "sequence shorter than conv kernel"

    B_pad = _round_up(B, 16)                        # bf16 sublane packing
    TB = min(B_pad, 128)
    louts = [int(x.shape[2]) - ksize + 1 for x in xs]
    L_out_max = max(louts)
    TL = min(_round_up(L_out_max, 16), 256)
    Lp = _round_up(L_out_max, TL)

    # Lane-dense im2col slab per branch (taps folded into the minor dim);
    # pure XLA layout plumbing, cast to bf16 to halve HBM/DMA bytes.
    patches = []
    for x in xs:
        x = jnp.transpose(x, (0, 2, 1))             # NCL -> NLC (B, L, F)
        x = jnp.pad(x, ((0, B_pad - B), (0, 0), (0, 0)))
        lo = x.shape[1] - ksize + 1
        p = jnp.concatenate([x[:, k:k + lo, :] for k in range(ksize)], axis=-1)
        p = jnp.pad(p, ((0, 0), (0, Lp - lo), (0, 0)))
        patches.append(p.astype(jnp.bfloat16))
    p_stk = jnp.stack(patches, axis=0)              # (n_inputs, B_pad, Lp, K*F)
    lout = jnp.asarray(louts, jnp.int32)

    # 1) all CNN branches + embeddings + implicit concat   (one pallas_call)
    emb_cat = branch_conv_embed(lout, p_stk,
                                params["conv_w"], params["conv_b"],
                                params["emb_w"], params["emb_b"],
                                tb=TB, tl=TL)        # (B_pad, n_inputs*Ep) bf16

    # 2) Res_FullyConnect combine layers + classifier       (one pallas_call)
    logits = dense_chain(emb_cat, params["chain_w"], params["chain_b"],
                         params["chain_act"], tb=TB)  # (B_pad, Np) f32
    return logits[:B, :n_classes]


# ----------------------------------------------------------------------------
# Main
# ----------------------------------------------------------------------------
if __name__ == "__main__":
    batch = 2
    n_features = 4          # e.g. one-hot DNA alphabet
    l_seqs = [16, 16]       # two input sequences -> two CNN branches
    n_inputs = len(l_seqs)
    ksize = 5
    n_kernels = 8
    cnn_embedding = 32      # (516 in the reference defaults; shrunk for demo)
    n_combine_layers = 3
    combine_widening = 1.1
    n_classes = 1

    key = jax.random.PRNGKey(0)
    pkey, *xkeys = jax.random.split(key, 1 + n_inputs)

    params = init_params(
        pkey,
        n_inputs=n_inputs, n_features=n_features, ksize=ksize,
        n_kernels=n_kernels, cnn_embedding=cnn_embedding,
        n_combine_layers=n_combine_layers, combine_widening=combine_widening,
        n_classes=n_classes,
    )

    # inputs: list of NCL tensors, one per CNN branch
    xs = [jax.random.normal(xkeys[c], (batch, n_features, l_seqs[c]), jnp.float32)
          for c in range(n_inputs)]

    out = combined_network_forward(params, xs)
    out = jax.block_until_ready(out)
    assert out.shape == (batch, n_classes), out.shape
    print("KERNEL_OK")
</pallas_src>

<mosaic_0001>
module attributes {stable_mosaic.version = 11 : i64} {
  func.func @branch_conv_embed_kernel(%arg0: i32, %arg1: i32, %arg2: i32, %arg3: memref<2xi32, #tpu.memory_space<smem>>, %arg4: memref<1x16x16x20xbf16, #tpu.memory_space<vmem>>, %arg5: memref<1x20x128xbf16, #tpu.memory_space<vmem>>, %arg6: memref<1x1x128xf32, #tpu.memory_space<vmem>>, %arg7: memref<1x128x128xbf16, #tpu.memory_space<vmem>>, %arg8: memref<1x1x128xf32, #tpu.memory_space<vmem>>, %arg9: memref<16x128xbf16, #tpu.memory_space<vmem>>, %arg10: memref<16x128xf32, #tpu.memory_space<vmem>>) attributes {dimension_semantics = [#tpu.dimension_semantics<parallel>, #tpu.dimension_semantics<parallel>, #tpu.dimension_semantics<arbitrary>], iteration_bounds = array<i64: 2, 1, 1>, scalar_prefetch = 1 : i64, scratch_operands = 1 : i64, tpu.core_type = #tpu.core_type<tc>, window_params = [{transform_indices = @transform_0, window_bounds = array<i64: 1, 16, 16, 20>}, {transform_indices = @transform_1, window_bounds = array<i64: 1, 20, 128>}, {transform_indices = @transform_2, window_bounds = array<i64: 1, 1, 128>}, {transform_indices = @transform_3, window_bounds = array<i64: 1, 128, 128>}, {transform_indices = @transform_4, window_bounds = array<i64: 1, 1, 128>}, {transform_indices = @transform_5, window_bounds = array<i64: 16, 128>}]} {
    %c0_i32 = arith.constant 0 : i32
    %0 = arith.cmpi eq, %arg2, %c0_i32 : i32
    %1 = arith.extui %0 : i1 to i32
    %c0_i32_0 = arith.constant 0 : i32
    %2 = arith.cmpi ne, %1, %c0_i32_0 : i32
    scf.if %2 {
      %cst = arith.constant -1.000000e+30 : f32
      %12 = vector.broadcast %cst : f32 to vector<16x128xf32>
      %c0 = arith.constant 0 : index
      %c0_4 = arith.constant 0 : index
      %13 = vector.load %arg10[%c0, %c0_4] : memref<16x128xf32, #tpu.memory_space<vmem>>, vector<16x128xf32>
      tpu.vector_store %arg10[%c0, %c0_4], %12 {strides = array<i32>} : memref<16x128xf32, #tpu.memory_space<vmem>>, vector<16x128xf32>,
    } else {
    }
    %3 = arith.index_cast %arg0 : i32 to index
    %4 = memref.load %arg3[%3] : memref<2xi32, #tpu.memory_space<smem>>
    %c16_i32 = arith.constant 16 : i32
    %5 = arith.muli %arg2, %c16_i32 : i32
    %6 = arith.cmpi slt, %5, %4 : i32
    %7 = arith.extui %6 : i1 to i32
    %c0_i32_1 = arith.constant 0 : i32
    %8 = arith.cmpi ne, %7, %c0_i32_1 : i32
    scf.if %8 {
      %c0 = arith.constant 0 : index
      %c0_4 = arith.constant 0 : index
      %c0_5 = arith.constant 0 : index
      %c0_6 = arith.constant 0 : index
      %12 = vector.load %arg4[%c0, %c0_4, %c0_5, %c0_6] : memref<1x16x16x20xbf16, #tpu.memory_space<vmem>>, vector<1x16x16x20xbf16>
      %13 = vector.shape_cast %12 : vector<1x16x16x20xbf16> to vector<16x16x20xbf16>
      %14 = vector.shape_cast %13 : vector<16x16x20xbf16> to vector<256x20xbf16>
      %c0_7 = arith.constant 0 : index
      %c0_8 = arith.constant 0 : index
      %c0_9 = arith.constant 0 : index
      %15 = vector.load %arg5[%c0_7, %c0_8, %c0_9] : memref<1x20x128xbf16, #tpu.memory_space<vmem>>, vector<1x20x128xbf16>
      %16 = vector.shape_cast %15 : vector<1x20x128xbf16> to vector<20x128xbf16>
      %cst = arith.constant dense<0.000000e+00> : vector<256x128xf32>
      %17 = tpu.matmul %14, %16, %cst {dimension_numbers = #tpu.dot_dimension_numbers<[1], [0], [0], [1], [0, 0, 1, 1], [], []>} : vector<256x20xbf16>, vector<20x128xbf16>, vector<256x128xf32> -> vector<256x128xf32>
      %c0_10 = arith.constant 0 : index
      %c0_11 = arith.constant 0 : index
      %c0_12 = arith.constant 0 : index
      %18 = vector.load %arg6[%c0_10, %c0_11, %c0_12] : memref<1x1x128xf32, #tpu.memory_space<vmem>>, vector<1x1x128xf32>
      %19 = vector.shape_cast %18 : vector<1x1x128xf32> to vector<1x128xf32>
      %20 = vector.broadcast %19 : vector<1x128xf32> to vector<256x128xf32>
      %21 = arith.addf %17, %20 : vector<256x128xf32>
      %cst_13 = arith.constant 5.000000e-01 : f32
      %22 = vector.broadcast %cst_13 : f32 to vector<256x128xf32>
      %23 = arith.mulf %22, %21 : vector<256x128xf32>
      %cst_14 = arith.constant 4.471500e-02 : f32
      %24 = vector.broadcast %cst_14 : f32 to vector<256x128xf32>
      %25 = arith.mulf %24, %21 : vector<256x128xf32>
      %26 = arith.mulf %25, %21 : vector<256x128xf32>
      %27 = arith.mulf %26, %21 : vector<256x128xf32>
      %28 = arith.addf %21, %27 : vector<256x128xf32>
      %cst_15 = arith.constant 0.797884583 : f32
      %29 = vector.broadcast %cst_15 : f32 to vector<256x128xf32>
      %30 = arith.mulf %29, %28 : vector<256x128xf32>
      %31 = math.tanh %30 : vector<256x128xf32>
      %cst_16 = arith.constant 1.000000e+00 : f32
      %32 = vector.broadcast %cst_16 : f32 to vector<256x128xf32>
      %33 = arith.addf %32, %31 : vector<256x128xf32>
      %34 = arith.mulf %23, %33 : vector<256x128xf32>
      %35 = vector.shape_cast %34 : vector<256x128xf32> to vector<16x16x128xf32>
      %36 = tpu.iota {dimensions = array<i32: 1>} : vector<1x16x1xi32>
      %37 = vector.broadcast %5 : i32 to vector<1x16x1xi32>
      %38 = arith.addi %37, %36 : vector<1x16x1xi32>
      %39 = vector.broadcast %4 : i32 to vector<1x16x1xi32>
      %40 = arith.cmpi slt, %38, %39 : vector<1x16x1xi32>
      %cst_17 = arith.constant -1.000000e+30 : f32
      %41 = vector.shape_cast %40 : vector<1x16x1xi1> to vector<1x16x1xi1>
      %42 = vector.broadcast %41 : vector<1x16x1xi1> to vector<16x16x128xi1>
      %43 = vector.broadcast %cst_17 : f32 to vector<16x16x128xf32>
      %44 = arith.select %42, %35, %43 : vector<16x16x128xi1>, vector<16x16x128xf32>
      %c0_18 = arith.constant 0 : index
      %c0_19 = arith.constant 0 : index
      %45 = vector.load %arg10[%c0_18, %c0_19] : memref<16x128xf32, #tpu.memory_space<vmem>>, vector<16x128xf32>
      %cst_20 = arith.constant dense<0xFF800000> : vector<16x128xf32>
      %46 = vector.multi_reduction <maximumf>, %44, %cst_20 [1] : vector<16x16x128xf32> to vector<16x128xf32>
      %47 = arith.maximumf %45, %46 : vector<16x128xf32>
      %c0_21 = arith.constant 0 : index
      %c0_22 = arith.constant 0 : index
      %48 = vector.load %arg10[%c0_21, %c0_22] : memref<16x128xf32, #tpu.memory_space<vmem>>, vector<16x128xf32>
      tpu.vector_store %arg10[%c0_21, %c0_22], %47 {strides = array<i32>} : memref<16x128xf32, #tpu.memory_space<vmem>>, vector<16x128xf32>,
    } else {
    }
    %c0_i32_2 = arith.constant 0 : i32
    %9 = arith.cmpi eq, %arg2, %c0_i32_2 : i32
    %10 = arith.extui %9 : i1 to i32
    %c0_i32_3 = arith.constant 0 : i32
    %11 = arith.cmpi ne, %10, %c0_i32_3 : i32
    scf.if %11 {
      %c0 = arith.constant 0 : index
      %c0_4 = arith.constant 0 : index
      %12 = vector.load %arg10[%c0, %c0_4] : memref<16x128xf32, #tpu.memory_space<vmem>>, vector<16x128xf32>
      %13 = arith.truncf %12 : vector<16x128xf32> to vector<16x128xbf16>
      %c0_5 = arith.constant 0 : index
      %c0_6 = arith.constant 0 : index
      %c0_7 = arith.constant 0 : index
      %14 = vector.load %arg7[%c0_5, %c0_6, %c0_7] : memref<1x128x128xbf16, #tpu.memory_space<vmem>>, vector<1x128x128xbf16>
      %15 = vector.shape_cast %14 : vector<1x128x128xbf16> to vector<128x128xbf16>
      %cst = arith.constant dense<0.000000e+00> : vector<16x128xf32>
      %16 = tpu.matmul %13, %15, %cst {dimension_numbers = #tpu.dot_dimension_numbers<[1], [0], [0], [1], [0, 0, 1, 1], [], []>} : vector<16x128xbf16>, vector<128x128xbf16>, vector<16x128xf32> -> vector<16x128xf32>
      %c0_8 = arith.constant 0 : index
      %c0_9 = arith.constant 0 : index
      %c0_10 = arith.constant 0 : index
      %17 = vector.load %arg8[%c0_8, %c0_9, %c0_10] : memref<1x1x128xf32, #tpu.memory_space<vmem>>, vector<1x1x128xf32>
      %18 = vector.shape_cast %17 : vector<1x1x128xf32> to vector<1x128xf32>
      %19 = vector.broadcast %18 : vector<1x128xf32> to vector<16x128xf32>
      %20 = arith.addf %16, %19 : vector<16x128xf32>
      %21 = arith.truncf %20 : vector<16x128xf32> to vector<16x128xbf16>
      %c0_11 = arith.constant 0 : index
      %c0_12 = arith.constant 0 : index
      %22 = vector.load %arg9[%c0_11, %c0_12] : memref<16x128xbf16, #tpu.memory_space<vmem>>, vector<16x128xbf16>
      tpu.vector_store %arg9[%c0_11, %c0_12], %21 {strides = array<i32>} : memref<16x128xbf16, #tpu.memory_space<vmem>>, vector<16x128xbf16>,
    } else {
    }
    return
  }
  func.func @transform_0(%arg0: i32, %arg1: i32, %arg2: i32, %arg3: memref<2xi32, #tpu.memory_space<smem>>) -> (i32, i32, i32, i32) {
    %c0_i32 = arith.constant 0 : i32
    %c0_i32_0 = arith.constant 0 : i32
    return %arg0, %arg1, %arg2, %c0_i32 : i32, i32, i32, i32
  }
  func.func @transform_1(%arg0: i32, %arg1: i32, %arg2: i32, %arg3: memref<2xi32, #tpu.memory_space<smem>>) -> (i32, i32, i32) {
    %c0_i32 = arith.constant 0 : i32
    %c0_i32_0 = arith.constant 0 : i32
    %c0_i32_1 = arith.constant 0 : i32
    return %arg0, %c0_i32, %c0_i32_0 : i32, i32, i32
  }
  func.func @transform_2(%arg0: i32, %arg1: i32, %arg2: i32, %arg3: memref<2xi32, #tpu.memory_space<smem>>) -> (i32, i32, i32) {
    %c0_i32 = arith.constant 0 : i32
    %c0_i32_0 = arith.constant 0 : i32
    %c0_i32_1 = arith.constant 0 : i32
    return %arg0, %c0_i32, %c0_i32_0 : i32, i32, i32
  }
  func.func @transform_3(%arg0: i32, %arg1: i32, %arg2: i32, %arg3: memref<2xi32, #tpu.memory_space<smem>>) -> (i32, i32, i32) {
    %c0_i32 = arith.constant 0 : i32
    %c0_i32_0 = arith.constant 0 : i32
    %c0_i32_1 = arith.constant 0 : i32
    return %arg0, %c0_i32, %c0_i32_0 : i32, i32, i32
  }
  func.func @transform_4(%arg0: i32, %arg1: i32, %arg2: i32, %arg3: memref<2xi32, #tpu.memory_space<smem>>) -> (i32, i32, i32) {
    %c0_i32 = arith.constant 0 : i32
    %c0_i32_0 = arith.constant 0 : i32
    %c0_i32_1 = arith.constant 0 : i32
    return %arg0, %c0_i32, %c0_i32_0 : i32, i32, i32
  }
  func.func @transform_5(%arg0: i32, %arg1: i32, %arg2: i32, %arg3: memref<2xi32, #tpu.memory_space<smem>>) -> (i32, i32) {
    %c0_i32 = arith.constant 0 : i32
    return %arg1, %arg0 : i32, i32
  }
}

</mosaic_0001>

<llo_original>
// kernel: tpu_custom_call.1
$region0: #{tpu_custom_call.1}
  #allocation0 [shape = 'u32[]', space=smem, size = 0x4, offset = 0x4, fixed_abs, tag = 'smem constant byte address 0x4 - core index']
  #allocation1 [shape = 'u32[144,128]{1,0:T(1,128)}', space=vmem, size = 0x12000, scoped, tag = 'internal scratch']
  #allocation2 [shape = 'f32[16,128]{1,0:T(8,128)}', space=vmem, size = 0x2000, scoped, tag = 'scratch operand']
  #allocation3 [shape = 's32[1]{0}', space=sflag, size = 0x4, scoped, tag = 'scoped memory for tpu_custom_call.1']
  #allocation4 [shape = 'u8[512]{0}', space=smem, size = 0x200, scoped, tag = 'prefetched SMEM operand 0']
  %s0 = inlined_call_operand.vmem [shape: s32[2], index: 0, kind: input, shape index: {}]
  %s1 = inlined_call_operand.hbm [shape: bf16[2,16,16,20], index: 1, kind: input, shape index: {}]
  %s2 = inlined_call_operand.vmem [shape: bf16[2,20,128], index: 2, kind: input, shape index: {}]
  %s3 = inlined_call_operand.vmem [shape: f32[2,1,128], index: 3, kind: input, shape index: {}]
  %s4 = inlined_call_operand.hbm [shape: bf16[2,128,128], index: 4, kind: input, shape index: {}]
  %s5 = inlined_call_operand.vmem [shape: f32[2,1,128], index: 5, kind: input, shape index: {}]
  %s6 = inlined_call_operand.hbm [shape: bf16[16,256], index: 6, kind: output, shape index: {}]
  %s7 = sld [smem:[#allocation0]]
  $region73: #{tpu_custom_call.1} parent=0
    _
  %s9 = ssub.s32 1, %s7
  %s10 = scalar_select 0, %s9, %s7
  %s11 = sshll.u32 %s0, 4
  %s12 = int_to_ptr.vmem [resolvable:$true] %s11
  %14 = dma.vmem_to_smem %s12, 16, [#allocation4], [#allocation3]
  %15 = dma.done [#allocation3], 16
  %16 = sfence
  $region1: #{tpu_custom_call.1} parent=0
    #allocation5 [shape = 'u8[131072]{0}', space=vmem, size = 0x20000, scoped, tag = 'input window, operand 1']
    #allocation6 [shape = 's32[2]{0}', space=sflag, size = 0x8, scoped, tag = 'scoped memory for tpu_custom_call.1']
    #allocation7 [shape = 's32[2]{0}', space=sflag, size = 0x8, scoped, tag = 'scoped memory for tpu_custom_call.1']
    #allocation8 [shape = 'u8[65536]{0}', space=vmem, size = 0x10000, scoped, tag = 'input window, operand 4']
    #allocation9 [shape = 's32[2]{0}', space=sflag, size = 0x8, scoped, tag = 'scoped memory for tpu_custom_call.1']
    #allocation10 [shape = 'u8[8192]{0}', space=vmem, size = 0x2000, scoped, tag = 'output window, operand 0']
    %17 = vsyncpa [#allocation6], 0
    %s18 = scalar_lea.sflag [#allocation6], 1
    %19 = vsyncpa %s18, 0
    %20 = vsyncpa [#allocation9], 0
    %s21 = scalar_lea.sflag [#allocation9], 1
    %22 = vsyncpa %s21, 0
    %23 = vsyncpa [#allocation7], 0
    %s24 = scalar_lea.sflag [#allocation7], 1
    %25 = vsyncpa %s24, 0
    loop: start=0, step=1, limit=4
    $region2: #{tpu_custom_call.1} parent=1 // loop_pre_header
      _
    $region3: #{tpu_custom_call.1} parent=1 // loop_header
      %s27 = sphi 0, %s31
      %p28 = scmp.ge.s32.totalorder %s27, 4
      %s34 = sphi 0, %s53
      %s35 = sphi 0, %s49
      %s36 = sphi 0, %s45
      %s37 = sphi 0, %s34
      %s38 = sphi 0, %s35
      %s39 = sphi 0, %s36
      %s40 = sphi 0, %s37
      %s41 = sphi 0, %s38
      %s42 = sphi 0, %s39
      %s60 = sphi 0, %s62
      %s63 = sphi 0, %s60
      %s64 = sphi 0, %s63
      %s80 = sphi 0, %s64
      %s86 = sphi 0, %s88
      %s89 = sphi 0, %s86
      %s90 = sphi 0, %s89
      %s106 = sphi 0, %s90
      %s112 = sphi 0, %s114
      %s115 = sphi 0, %s112
      %s116 = sphi 0, %s115
      %s132 = sphi 0, %s116
      %s138 = sphi 0, %s140
      %s141 = sphi 0, %s138
      %s142 = sphi 0, %s141
      %s158 = sphi 0, %s142
      %s164 = sphi 0, %s166
      %s167 = sphi 0, %s164
      %s168 = sphi 0, %s167
      %s184 = sphi 0, %s168
      %s192 = sphi 0, %s194
      %s195 = sphi 0, %s192
      %s196 = sphi 0, %s195
      %s212 = sphi 0, %s196
    $region4: #{tpu_custom_call.1} parent=1 // loop_header_branch
      %30 = sbr.rel (%p28) target = $region8
    $region5: #{tpu_custom_call.1} parent=1 // loop_body
      %s32 = ssub.s32 %s27, 1
      %s33 = ssub.s32 %s27, 2
      %s43 = sadd.s32 1, %s36
      %p44 = scmp.ge.s32.totalorder %s43, 1
      %s45 = scalar_select %p44, 0, %s43
      %s46 = sadd.s32 1, %s35
      %s47 = scalar_select %p44, %s46, %s35
      %p48 = scmp.ge.s32.totalorder %s47, 1
      %s49 = scalar_select %p48, 0, %s47
      %s50 = sadd.s32 1, %s34
      %s51 = scalar_select %p48, %s50, %s34
      %p52 = scmp.ge.s32.totalorder %s51, 2
      %s53 = scalar_select %p52, 0, %s51
      %s54 = ssub.s32 %s34, %s53
      %s55 = ssub.s32 %s35, %s49
      %s56 = sor.u32 %s54, %s55
      %s57 = ssub.s32 %s36, %s45
      %s58 = sor.u32 %s56, %s57
      %p59 = scmp.eq.s32.totalorder %s58, 0
      %s61 = sadd.s32 %s60, 1
      %s62 = scalar_select %p59, %s60, %s61
      %p65 = pneg %p59
      %p66 = scmp.eq.s32.totalorder %s27, 1
      %p67 = por %p65, %p66
      %p68 = scmp.ne.s32.totalorder %s60, %s63
      %p69 = scmp.eq.s32.totalorder %s27, 0
      %p70 = por %p68, %p69
      %p71 = scmp.ne.s32.totalorder %s60, %s63
      %p72 = scmp.eq.s32.totalorder %s32, 1
      %p73 = por %p71, %p72
      %p74 = scmp.ne.s32.totalorder %s63, %s64
      %p75 = scmp.eq.s32.totalorder %s32, 0
      %p76 = por %p74, %p75
      %p77 = scmp.ne.s32.totalorder %s63, %s64
      %p78 = scmp.eq.s32.totalorder %s33, 1
      %p79 = por %p77, %p78
      %p81 = scmp.ne.s32.totalorder %s64, %s80
      %p82 = scmp.eq.s32.totalorder %s33, 0
      %p83 = por %p81, %p82
      %s84 = ssub.s32 %s34, %s53
      %p85 = scmp.eq.s32.totalorder %s84, 0
      %s87 = sadd.s32 %s86, 1
      %s88 = scalar_select %p85, %s86, %s87
      %p91 = pneg %p85
      %p92 = scmp.eq.s32.totalorder %s27, 1
      %p93 = por %p91, %p92
      %p94 = scmp.ne.s32.totalorder %s86, %s89
      %p95 = scmp.eq.s32.totalorder %s27, 0
      %p96 = por %p94, %p95
      %p97 = scmp.ne.s32.totalorder %s86, %s89
      %p98 = scmp.eq.s32.totalorder %s32, 1
      %p99 = por %p97, %p98
      %p100 = scmp.ne.s32.totalorder %s89, %s90
      %p101 = scmp.eq.s32.totalorder %s32, 0
      %p102 = por %p100, %p101
      %p103 = scmp.ne.s32.totalorder %s89, %s90
      %p104 = scmp.eq.s32.totalorder %s33, 1
      %p105 = por %p103, %p104
      %p107 = scmp.ne.s32.totalorder %s90, %s106
      %p108 = scmp.eq.s32.totalorder %s33, 0
      %p109 = por %p107, %p108
      %s110 = ssub.s32 %s34, %s53
      %p111 = scmp.eq.s32.totalorder %s110, 0
      %s113 = sadd.s32 %s112, 1
      %s114 = scalar_select %p111, %s112, %s113
      %p117 = pneg %p111
      %p118 = scmp.eq.s32.totalorder %s27, 1
      %p119 = por %p117, %p118
      %p120 = scmp.ne.s32.totalorder %s112, %s115
      %p121 = scmp.eq.s32.totalorder %s27, 0
      %p122 = por %p120, %p121
      %p123 = scmp.ne.s32.totalorder %s112, %s115
      %p124 = scmp.eq.s32.totalorder %s32, 1
      %p125 = por %p123, %p124
      %p126 = scmp.ne.s32.totalorder %s115, %s116
      %p127 = scmp.eq.s32.totalorder %s32, 0
      %p128 = por %p126, %p127
      %p129 = scmp.ne.s32.totalorder %s115, %s116
      %p130 = scmp.eq.s32.totalorder %s33, 1
      %p131 = por %p129, %p130
      %p133 = scmp.ne.s32.totalorder %s116, %s132
      %p134 = scmp.eq.s32.totalorder %s33, 0
      %p135 = por %p133, %p134
      %s136 = ssub.s32 %s34, %s53
      %p137 = scmp.eq.s32.totalorder %s136, 0
      %s139 = sadd.s32 %s138, 1
      %s140 = scalar_select %p137, %s138, %s139
      %p143 = pneg %p137
      %p144 = scmp.eq.s32.totalorder %s27, 1
      %p145 = por %p143, %p144
      %p146 = scmp.ne.s32.totalorder %s138, %s141
      %p147 = scmp.eq.s32.totalorder %s27, 0
      %p148 = por %p146, %p147
      %p149 = scmp.ne.s32.totalorder %s138, %s141
      %p150 = scmp.eq.s32.totalorder %s32, 1
      %p151 = por %p149, %p150
      %p152 = scmp.ne.s32.totalorder %s141, %s142
      %p153 = scmp.eq.s32.totalorder %s32, 0
      %p154 = por %p152, %p153
      %p155 = scmp.ne.s32.totalorder %s141, %s142
      %p156 = scmp.eq.s32.totalorder %s33, 1
      %p157 = por %p155, %p156
      %p159 = scmp.ne.s32.totalorder %s142, %s158
      %p160 = scmp.eq.s32.totalorder %s33, 0
      %p161 = por %p159, %p160
      %s162 = ssub.s32 %s34, %s53
      %p163 = scmp.eq.s32.totalorder %s162, 0
      %s165 = sadd.s32 %s164, 1
      %s166 = scalar_select %p163, %s164, %s165
      %p169 = pneg %p163
      %p170 = scmp.eq.s32.totalorder %s27, 1
      %p171 = por %p169, %p170
      %p172 = scmp.ne.s32.totalorder %s164, %s167
      %p173 = scmp.eq.s32.totalorder %s27, 0
      %p174 = por %p172, %p173
      %p175 = scmp.ne.s32.totalorder %s164, %s167
      %p176 = scmp.eq.s32.totalorder %s32, 1
      %p177 = por %p175, %p176
      %p178 = scmp.ne.s32.totalorder %s167, %s168
      %p179 = scmp.eq.s32.totalorder %s32, 0
      %p180 = por %p178, %p179
      %p181 = scmp.ne.s32.totalorder %s167, %s168
      %p182 = scmp.eq.s32.totalorder %s33, 1
      %p183 = por %p181, %p182
      %p185 = scmp.ne.s32.totalorder %s168, %s184
      %p186 = scmp.eq.s32.totalorder %s33, 0
      %p187 = por %p185, %p186
      %s188 = ssub.s32 %s35, %s49
      %s189 = ssub.s32 %s34, %s53
      %s190 = sor.u32 %s188, %s189
      %p191 = scmp.eq.s32.totalorder %s190, 0
      %s193 = sadd.s32 %s192, 1
      %s194 = scalar_select %p191, %s192, %s193
      %p197 = pneg %p191
      %p198 = scmp.eq.s32.totalorder %s27, 1
      %p199 = por %p197, %p198
      %p200 = scmp.ne.s32.totalorder %s192, %s195
      %p201 = scmp.eq.s32.totalorder %s27, 0
      %p202 = por %p200, %p201
      %p203 = scmp.ne.s32.totalorder %s192, %s195
      %p204 = scmp.eq.s32.totalorder %s32, 1
      %p205 = por %p203, %p204
      %p206 = scmp.ne.s32.totalorder %s195, %s196
      %p207 = scmp.eq.s32.totalorder %s32, 0
      %p208 = por %p206, %p207
      %p209 = scmp.ne.s32.totalorder %s195, %s196
      %p210 = scmp.eq.s32.totalorder %s33, 1
      %p211 = por %p209, %p210
      %p213 = scmp.ne.s32.totalorder %s196, %s212
      %p214 = scmp.eq.s32.totalorder %s33, 0
      %p215 = por %p213, %p214
      %p216 = scmp.le.s32.totalorder 1, %s27
      %p217 = scmp.lt.s32.totalorder %s27, 3
      %p218 = pnand %p216, %p217
      %p219 = pneg %p218
      // Predicated region
      $region9: #{tpu_custom_call.1} parent=5 // pred_check
        _
      $region10: #{tpu_custom_call.1} parent=5 // pred_check_branch
        %221 = sbr.rel (%p218) target = $region12
      $region11: #{tpu_custom_call.1} parent=5 // pred_region
        %s222 = ssub.s32 %s27, 1
      $region12: #{tpu_custom_call.1} parent=5 // pred_fallthru
        _
      %p223 = scmp.lt.s32.totalorder %s27, 2
      // Predicated region
      $region13: #{tpu_custom_call.1} parent=5 // pred_check
        %p224 = pneg %p223
      $region14: #{tpu_custom_call.1} parent=5 // pred_check_branch
        %226 = sbr.rel (%p224) target = $region16
      $region15: #{tpu_custom_call.1} parent=5 // pred_region
        // Predicated region
        $region17: #{tpu_custom_call.1} parent=15 // pred_check
          %p227 = pneg %p70
        $region18: #{tpu_custom_call.1} parent=15 // pred_check_branch
          %229 = sbr.rel (%p227) target = $region20
        $region19: #{tpu_custom_call.1} parent=15 // pred_region
          %s230 = sand.u32 %s60, 1
          %s231 = scalar_lea.sflag [#allocation6], %s230
          %s232 = sand.u32 %s60, 1
          %s233 = smul.addr %s232, 128
          %s234 = scalar_lea.vmem [#allocation5], %s233
          %s235 = smul.u32 16, %s35
          %s236 = smul.u32 2, %s36
          %s238 = ssub.s32 2048, 2048
          %239 = vsyncadd %s231, %s238
          %s240 = smul.addr %s235, 2
          %s241 = sadd.s32 %s236, %s240
          %s242 = smul.addr %s34, 32
          %s243 = sadd.s32 %s241, %s242
          %s244 = smul.addr %s243, 64
          %s245 = scalar_lea.hbm %s1, %s244
          %s246 = sshll.u32 %s234, 4
          %s247 = int_to_ptr.vmem [resolvable:$true] %s246
          %252 = dma.hbm_to_vmem [thread:$0]  %s245, 2048, %s247, %s231, 64, 64, 4
        $region20: #{tpu_custom_call.1} parent=15 // pred_fallthru
          _
        // Predicated region
        $region21: #{tpu_custom_call.1} parent=15 // pred_check
          %p253 = pneg %p96
        $region22: #{tpu_custom_call.1} parent=15 // pred_check_branch
          %255 = sbr.rel (%p253) target = $region24
        $region23: #{tpu_custom_call.1} parent=15 // pred_region
          %p256 = scmp.lt.s32.totalorder %s34, 1
          %s257 = scalar_select %p256, %s34, 1
          %s258 = smul.addr %s257, 3
          %s259 = smul.addr %s258, 4
          %s260 = scalar_lea.vmem %s2, %s259
        $region24: #{tpu_custom_call.1} parent=15 // pred_fallthru
          _
        // Predicated region
        $region25: #{tpu_custom_call.1} parent=15 // pred_check
          %p261 = pneg %p122
        $region26: #{tpu_custom_call.1} parent=15 // pred_check_branch
          %263 = sbr.rel (%p261) target = $region28
        $region27: #{tpu_custom_call.1} parent=15 // pred_region
          %p264 = scmp.lt.s32.totalorder %s34, 1
          %s265 = scalar_select %p264, %s34, 1
          %s266 = scalar_lea.vmem %s3, %s265
        $region28: #{tpu_custom_call.1} parent=15 // pred_fallthru
          _
        // Predicated region
        $region29: #{tpu_custom_call.1} parent=15 // pred_check
          %p267 = pneg %p148
        $region30: #{tpu_custom_call.1} parent=15 // pred_check_branch
          %269 = sbr.rel (%p267) target = $region32
        $region31: #{tpu_custom_call.1} parent=15 // pred_region
          %s270 = sand.u32 %s138, 1
          %s271 = scalar_lea.sflag [#allocation9], %s270
          %s272 = sand.u32 %s138, 1
          %s273 = smul.addr %s272, 64
          %s274 = scalar_lea.vmem [#allocation8], %s273
          %s276 = ssub.s32 1024, 1024
          %277 = vsyncadd %s271, %s276
          %s278 = smul.addr %s34, 16
          %s279 = smul.addr %s278, 64
          %s280 = scalar_lea.hbm %s4, %s279
          %s281 = sshll.u32 %s274, 4
          %s282 = int_to_ptr.vmem [resolvable:$true] %s281
          %287 = dma.hbm_to_vmem [thread:$0]  %s280, 1024, %s282, %s271, 64, 64, 4
        $region32: #{tpu_custom_call.1} parent=15 // pred_fallthru
          _
        // Predicated region
        $region33: #{tpu_custom_call.1} parent=15 // pred_check
          %p288 = pneg %p174
        $region34: #{tpu_custom_call.1} parent=15 // pred_check_branch
          %290 = sbr.rel (%p288) target = $region36
        $region35: #{tpu_custom_call.1} parent=15 // pred_region
          %p291 = scmp.lt.s32.totalorder %s34, 1
          %s292 = scalar_select %p291, %s34, 1
          %s293 = scalar_lea.vmem %s5, %s292
        $region36: #{tpu_custom_call.1} parent=15 // pred_fallthru
          _
      $region16: #{tpu_custom_call.1} parent=5 // pred_fallthru
        _
      %p294 = scmp.le.s32.totalorder 1, %s27
      %p295 = scmp.lt.s32.totalorder %s27, 3
      %p296 = pnand %p294, %p295
      %p297 = pneg %p296
      // Predicated region
      $region37: #{tpu_custom_call.1} parent=5 // pred_check
        _
      $region38: #{tpu_custom_call.1} parent=5 // pred_check_branch
        %299 = sbr.rel (%p296) target = $region40
      $region39: #{tpu_custom_call.1} parent=5 // pred_region
        %s300 = ssub.s32 %s27, 1
        %s301 = sand.u32 %s63, 1
        %s302 = scalar_lea.sflag [#allocation6], %s301
        %s303 = sand.u32 %s63, 1
        %s304 = smul.addr %s303, 128
        %s305 = scalar_lea.vmem [#allocation5], %s304
        // Predicated region
        $region41: #{tpu_custom_call.1} parent=39 // pred_check
          %p306 = pneg %p76
        $region42: #{tpu_custom_call.1} parent=39 // pred_check_branch
          %308 = sbr.rel (%p306) target = $region44
        $region43: #{tpu_custom_call.1} parent=39 // pred_region
          %309 = dma.done %s302, 2048
        $region44: #{tpu_custom_call.1} parent=39 // pred_fallthru
          _
        %s310 = sand.u32 %s141, 1
        %s311 = scalar_lea.sflag [#allocation9], %s310
        %s312 = sand.u32 %s141, 1
        %s313 = smul.addr %s312, 64
        %s314 = scalar_lea.vmem [#allocation8], %s313
        // Predicated region
        $region45: #{tpu_custom_call.1} parent=39 // pred_check
          %p315 = pneg %p154
        $region46: #{tpu_custom_call.1} parent=39 // pred_check_branch
          %317 = sbr.rel (%p315) target = $region48
        $region47: #{tpu_custom_call.1} parent=39 // pred_region
          %318 = dma.done %s311, 1024
        $region48: #{tpu_custom_call.1} parent=39 // pred_fallthru
          _
        %s319 = sand.u32 %s63, 1
        %s320 = scalar_lea.sflag [#allocation6], %s319
        %s321 = sand.u32 %s63, 1
        %s322 = smul.addr %s321, 128
        %s323 = scalar_lea.vmem [#allocation5], %s322
        %p324 = pneg %p76
        %p325 = pneg %p73
        %p326 = scmp.lt.s32.totalorder %s37, 1
        %s327 = scalar_select %p326, %s37, 1
        %s328 = smul.addr %s327, 3
        %s329 = smul.addr %s328, 4
        %s330 = scalar_lea.vmem %s2, %s329
        %p331 = pneg %p102
        %p332 = pneg %p99
        %p333 = scmp.lt.s32.totalorder %s37, 1
        %s334 = scalar_select %p333, %s37, 1
        %s335 = scalar_lea.vmem %s3, %s334
        %p336 = pneg %p128
        %p337 = pneg %p125
        %s338 = sand.u32 %s141, 1
        %s339 = scalar_lea.sflag [#allocation9], %s338
        %s340 = sand.u32 %s141, 1
        %s341 = smul.addr %s340, 64
        %s342 = scalar_lea.vmem [#allocation8], %s341
        %p343 = pneg %p154
        %p344 = pneg %p151
        %p345 = scmp.lt.s32.totalorder %s37, 1
        %s346 = scalar_select %p345, %s37, 1
        %s347 = scalar_lea.vmem %s5, %s346
        %p348 = pneg %p180
        %p349 = pneg %p177
        %p350 = pneg %p208
        %p351 = pneg %p205
        %s352 = sand.u32 %s195, 1
        %s353 = scalar_lea.sflag [#allocation7], %s352
        %s354 = sand.u32 %s195, 1
        %s355 = smul.addr %s354, 8
        %s356 = scalar_lea.vmem [#allocation10], %s355
        %s357 = smul.u32 16, %s38
        %s358 = smul.u32 2, %s39
        %p359 = scmp.lt.s32.totalorder %s37, 1
        %s360 = scalar_select %p359, %s37, 1
        %s361 = smul.addr %s360, 3
        %s362 = smul.addr %s361, 4
        %s363 = scalar_lea.vmem %s2, %s362
        %p364 = scmp.lt.s32.totalorder %s37, 1
        %s365 = scalar_select %p364, %s37, 1
        %s366 = scalar_lea.vmem %s3, %s365
        %p367 = scmp.lt.s32.totalorder %s37, 1
        %s368 = scalar_select %p367, %s37, 1
        %s369 = scalar_lea.vmem %s5, %s368
        %s370 = smul.u32 2, %s38
        %p372 = scmp.eq.s32.totalorder %s39, 0
        // Predicated region
        $region49: #{tpu_custom_call.1} parent=39 // pred_check
          %p373 = pneg %p372
        $region50: #{tpu_custom_call.1} parent=39 // pred_check_branch
          %375 = sbr.rel (%p373) target = $region52
        $region51: #{tpu_custom_call.1} parent=39 // pred_region
          %376 = vst [vmem:[#allocation2] sm:$0xff] -1e+30
          %377 = vst [vmem:[#allocation2 + $0x8] sm:$0xff] -1e+30
        $region52: #{tpu_custom_call.1} parent=39 // pred_fallthru
          _
        %s378 = sld [smem:[#allocation4 + %s37]]
        %s379 = smul.u32 %s39, 16
        %p380 = scmp.lt.s32.totalorder %s379, %s378
        // Predicated region
        $region53: #{tpu_custom_call.1} parent=39 // pred_check
          %p381 = pneg %p380
        $region54: #{tpu_custom_call.1} parent=39 // pred_check_branch
          %383 = sbr.rel (%p381) target = $region56
        $region55: #{tpu_custom_call.1} parent=39 // pred_region
          %v384 = vld [vmem:[%s305] sm:$0xf]
          %v385 = vld [vmem:[%s305 + $0x4] sm:$0xf]
          %v386 = vld [vmem:[%s305 + $0x8] sm:$0xf]
          %v387 = vld [vmem:[%s305 + $0xc] sm:$0xf]
          %v388 = vld [vmem:[%s305 + $0x10] sm:$0xf]
          %v389 = vld [vmem:[%s305 + $0x14] sm:$0xf]
          %v390 = vld [vmem:[%s305 + $0x18] sm:$0xf]
          %v391 = vld [vmem:[%s305 + $0x1c] sm:$0xf]
          %v392 = vld [vmem:[%s305 + $0x20] sm:$0xf]
          %v393 = vld [vmem:[%s305 + $0x24] sm:$0xf]
          %v394 = vld [vmem:[%s305 + $0x28] sm:$0xf]
          %v395 = vld [vmem:[%s305 + $0x2c] sm:$0xf]
          %v396 = vld [vmem:[%s305 + $0x30] sm:$0xf]
          %v397 = vld [vmem:[%s305 + $0x34] sm:$0xf]
          %v398 = vld [vmem:[%s305 + $0x38] sm:$0xf]
          %v399 = vld [vmem:[%s305 + $0x3c] sm:$0xf]
          %v400 = vld [vmem:[%s305 + $0x40] sm:$0xf]
          %v401 = vld [vmem:[%s305 + $0x44] sm:$0xf]
          %v402 = vld [vmem:[%s305 + $0x48] sm:$0xf]
          %v403 = vld [vmem:[%s305 + $0x4c] sm:$0xf]
          %v404 = vld [vmem:[%s305 + $0x50] sm:$0xf]
          %v405 = vld [vmem:[%s305 + $0x54] sm:$0xf]
          %v406 = vld [vmem:[%s305 + $0x58] sm:$0xf]
          %v407 = vld [vmem:[%s305 + $0x5c] sm:$0xf]
          %v408 = vld [vmem:[%s305 + $0x60] sm:$0xf]
          %v409 = vld [vmem:[%s305 + $0x64] sm:$0xf]
          %v410 = vld [vmem:[%s305 + $0x68] sm:$0xf]
          %v411 = vld [vmem:[%s305 + $0x6c] sm:$0xf]
          %v412 = vld [vmem:[%s305 + $0x70] sm:$0xf]
          %v413 = vld [vmem:[%s305 + $0x74] sm:$0xf]
          %v414 = vld [vmem:[%s305 + $0x78] sm:$0xf]
          %v415 = vld [vmem:[%s305 + $0x7c] sm:$0xf]
          %v416 = vld [vmem:[%s363] sm:$0xf]
          %v417 = vld [vmem:[%s363 + $0x4] sm:$0xf]
          %v418 = vld [vmem:[%s363 + $0x8] sm:$0x3]
          %v419 = vld [vmem:[%s366] sm:$0x1]
          %v421 = vlaneseq
          %v422 = vshrl.u32 %v421, 7
          %v423 = vsub.s32 0, %v422
          %v424 = vrot.slane %v419, %v423
          %v458 = vunpack.c.l.b16 %v384
          %v459 = vunpack.c.l.b16 %v385
          %v460 = vunpack.c.l.b16 %v386
          %v461 = vunpack.c.l.b16 %v387
          %v462 = vunpack.c.l.b16 %v388
          %v463 = vunpack.c.l.b16 %v389
          %v464 = vunpack.c.l.b16 %v390
          %v465 = vunpack.c.l.b16 %v391
          %v466 = vunpack.c.l.b16 %v392
          %v467 = vunpack.c.l.b16 %v393
          %v468 = vunpack.c.l.b16 %v394
          %v469 = vunpack.c.l.b16 %v395
          %v470 = vunpack.c.l.b16 %v396
          %v471 = vunpack.c.l.b16 %v397
          %v472 = vunpack.c.l.b16 %v398
          %v473 = vunpack.c.l.b16 %v399
          %v474 = vunpack.c.l.b16 %v400
          %v475 = vunpack.c.l.b16 %v401
          %v476 = vunpack.c.l.b16 %v402
          %v477 = vunpack.c.l.b16 %v403
          %v478 = vunpack.c.l.b16 %v404
          %v479 = vunpack.c.l.b16 %v405
          %v480 = vunpack.c.l.b16 %v406
          %v481 = vunpack.c.l.b16 %v407
          %v482 = vunpack.c.l.b16 %v408
          %v483 = vunpack.c.l.b16 %v409
          %v484 = vunpack.c.l.b16 %v410
          %v485 = vunpack.c.l.b16 %v411
          %v486 = vunpack.c.l.b16 %v412
          %v487 = vunpack.c.l.b16 %v413
          %v488 = vunpack.c.l.b16 %v414
          %v489 = vunpack.c.l.b16 %v415
          %v490 = vpack.c.b16 %v459, %v458
          %v491 = vpack.c.b16 %v461, %v460
          %v492 = vpack.c.b16 %v463, %v462
          %v493 = vpack.c.b16 %v465, %v464
          %v494 = vpack.c.b16 %v467, %v466
          %v495 = vpack.c.b16 %v469, %v468
          %v496 = vpack.c.b16 %v471, %v470
          %v497 = vpack.c.b16 %v473, %v472
          %v498 = vpack.c.b16 %v475, %v474
          %v499 = vpack.c.b16 %v477, %v476
          %v500 = vpack.c.b16 %v479, %v478
          %v501 = vpack.c.b16 %v481, %v480
          %v502 = vpack.c.b16 %v483, %v482
          %v503 = vpack.c.b16 %v485, %v484
          %v504 = vpack.c.b16 %v487, %v486
          %v505 = vpack.c.b16 %v489, %v488
          %v509 = vunpack.c.l.b16 %v416
          %v510 = vunpack.c.l.b16 %v417
          %v511 = vunpack.c.l.b16 %v418
          %v512 = vpack.c.b16 %v510, %v509
          %v513 = vpack.c.b16 %v511, %v511
          %vm515 = vcmask 162816
          %v517 = vsel %vm515, %v490, 0
          %v520 = vsel %vm515, %v491, 0
          %v523 = vsel %vm515, %v492, 0
          %v526 = vsel %vm515, %v493, 0
          %v529 = vsel %vm515, %v494, 0
          %v532 = vsel %vm515, %v495, 0
          %v535 = vsel %vm515, %v496, 0
          %v538 = vsel %vm515, %v497, 0
          %v541 = vsel %vm515, %v498, 0
          %v544 = vsel %vm515, %v499, 0
          %v547 = vsel %vm515, %v500, 0
          %v550 = vsel %vm515, %v501, 0
          %v553 = vsel %vm515, %v502, 0
          %v556 = vsel %vm515, %v503, 0
          %v559 = vsel %vm515, %v504, 0
          %v562 = vsel %vm515, %v505, 0
          %vm564 = vcmask 1041408
          %v566 = vsel %vm564, %v513, 0
          %568 = vmatprep.subr.bf16.mxu0 0
          %569 = vmatpush1.bf16.msra.mxu0 %v512
          %570 = vmatprep.subr.bf16.mxu0 0
          %571 = vmatpush1.bf16.msra.mxu0 %v566
          %572 = vmatprep.subr.bf16.mxu0 0
          %573 = vmatpush1.bf16.msra.mxu0 0
          %574 = vmatprep.subr.bf16.mxu0 0
          %575 = vmatpush1.bf16.msra.mxu0 0
          %576 = vmatprep.subr.bf16.mxu0 0
          %577 = vmatpush1.bf16.msra.mxu0 0
          %578 = vmatprep.subr.bf16.mxu0 0
          %579 = vmatpush1.bf16.msra.mxu0 0
          %580 = vmatprep.subr.bf16.mxu0 0
          %581 = vmatpush1.bf16.msra.mxu0 0
          %582 = vmatprep.subr.bf16.mxu0 0
          %583 = vmatpush1.bf16.msra.mxu0 0
          %584 = vmatprep.subr.bf16.mxu0 0
          %585 = vmatpush1.bf16.msra.mxu0 0
          %586 = vmatprep.subr.bf16.mxu0 0
          %587 = vmatpush1.bf16.msra.mxu0 0
          %588 = vmatprep.subr.bf16.mxu0 0
          %589 = vmatpush1.bf16.msra.mxu0 0
          %590 = vmatprep.subr.bf16.mxu0 0
          %591 = vmatpush1.bf16.msra.mxu0 0
          %592 = vmatprep.subr.bf16.mxu0 0
          %593 = vmatpush1.bf16.msra.mxu0 0
          %594 = vmatprep.subr.bf16.mxu0 0
          %595 = vmatpush1.bf16.msra.mxu0 0
          %596 = vmatprep.subr.bf16.mxu0 0
          %597 = vmatpush1.bf16.msra.mxu0 0
          %598 = vmatprep.subr.bf16.mxu0 0
          %599 = vmatpush1.bf16.msra.mxu0 0
          %600 = vmatprep.mubr.bf16.mxu0 0
          %601 = vmatmul.mubr.bf16.gmra.mrb[0].mxu0 %v517
          %v602 = vpop.f32.mrb[0].mxu0
          %v603 = vadd.f32 %v424, %v602
          %v604 = vpop.f32.mrb[0].mxu0
          %v605 = vpop.f32.mrb[0].mxu0
          %v606 = vadd.f32 %v424, %v605
          %v607 = vpop.f32.mrb[0].mxu0
          %608 = vmatprep.mubr.bf16.mxu0 0
          %609 = vmatmul.mubr.bf16.gmra.mrb[0].mxu0 %v520
          %v610 = vpop.f32.mrb[0].mxu0
          %v611 = vadd.f32 %v424, %v610
          %v612 = vpop.f32.mrb[0].mxu0
          %v613 = vpop.f32.mrb[0].mxu0
          %v614 = vadd.f32 %v424, %v613
          %v615 = vpop.f32.mrb[0].mxu0
          %616 = vmatprep.mubr.bf16.mxu0 0
          %617 = vmatmul.mubr.bf16.gmra.mrb[0].mxu0 %v523
          %v618 = vpop.f32.mrb[0].mxu0
          %v619 = vadd.f32 %v424, %v618
          %v620 = vpop.f32.mrb[0].mxu0
          %v621 = vpop.f32.mrb[0].mxu0
          %v622 = vadd.f32 %v424, %v621
          %v623 = vpop.f32.mrb[0].mxu0
          %624 = vmatprep.mubr.bf16.mxu0 0
          %625 = vmatmul.mubr.bf16.gmra.mrb[0].mxu0 %v526
          %v626 = vpop.f32.mrb[0].mxu0
          %v627 = vadd.f32 %v424, %v626
          %v628 = vpop.f32.mrb[0].mxu0
          %v629 = vpop.f32.mrb[0].mxu0
          %v630 = vadd.f32 %v424, %v629
          %v631 = vpop.f32.mrb[0].mxu0
          %632 = vmatprep.mubr.bf16.mxu0 0
          %633 = vmatmul.mubr.bf16.gmra.mrb[0].mxu0 %v529
          %v634 = vpop.f32.mrb[0].mxu0
          %v635 = vadd.f32 %v424, %v634
          %v636 = vpop.f32.mrb[0].mxu0
          %v637 = vpop.f32.mrb[0].mxu0
          %v638 = vadd.f32 %v424, %v637
          %v639 = vpop.f32.mrb[0].mxu0
          %640 = vmatprep.mubr.bf16.mxu0 0
          %641 = vmatmul.mubr.bf16.gmra.mrb[0].mxu0 %v532
          %v642 = vpop.f32.mrb[0].mxu0
          %v643 = vadd.f32 %v424, %v642
          %v644 = vpop.f32.mrb[0].mxu0
          %v645 = vpop.f32.mrb[0].mxu0
          %v646 = vadd.f32 %v424, %v645
          %v647 = vpop.f32.mrb[0].mxu0
          %648 = vmatprep.mubr.bf16.mxu0 0
          %649 = vmatmul.mubr.bf16.gmra.mrb[0].mxu0 %v535
          %v650 = vpop.f32.mrb[0].mxu0
          %v651 = vadd.f32 %v424, %v650
          %v652 = vpop.f32.mrb[0].mxu0
          %v653 = vpop.f32.mrb[0].mxu0
          %v654 = vadd.f32 %v424, %v653
          %v655 = vpop.f32.mrb[0].mxu0
          %656 = vmatprep.mubr.bf16.mxu0 0
          %657 = vmatmul.mubr.bf16.gmra.mrb[0].mxu0 %v538
          %v658 = vpop.f32.mrb[0].mxu0
          %v659 = vadd.f32 %v424, %v658
          %v660 = vpop.f32.mrb[0].mxu0
          %v661 = vpop.f32.mrb[0].mxu0
          %v662 = vadd.f32 %v424, %v661
          %v663 = vpop.f32.mrb[0].mxu0
          %664 = vmatprep.mubr.bf16.mxu0 0
          %665 = vmatmul.mubr.bf16.gmra.mrb[0].mxu0 %v541
          %v666 = vpop.f32.mrb[0].mxu0
          %v667 = vadd.f32 %v424, %v666
          %v668 = vpop.f32.mrb[0].mxu0
          %v669 = vpop.f32.mrb[0].mxu0
          %v670 = vadd.f32 %v424, %v669
          %v671 = vpop.f32.mrb[0].mxu0
          %672 = vmatprep.mubr.bf16.mxu0 0
          %673 = vmatmul.mubr.bf16.gmra.mrb[0].mxu0 %v544
          %v674 = vpop.f32.mrb[0].mxu0
          %v675 = vadd.f32 %v424, %v674
          %v676 = vpop.f32.mrb[0].mxu0
          %v677 = vpop.f32.mrb[0].mxu0
          %v678 = vadd.f32 %v424, %v677
          %v679 = vpop.f32.mrb[0].mxu0
          %680 = vmatprep.mubr.bf16.mxu0 0
          %681 = vmatmul.mubr.bf16.gmra.mrb[0].mxu0 %v547
          %v682 = vpop.f32.mrb[0].mxu0
          %v683 = vadd.f32 %v424, %v682
          %v684 = vpop.f32.mrb[0].mxu0
          %v685 = vpop.f32.mrb[0].mxu0
          %v686 = vadd.f32 %v424, %v685
          %v687 = vpop.f32.mrb[0].mxu0
          %688 = vmatprep.mubr.bf16.mxu0 0
          %689 = vmatmul.mubr.bf16.gmra.mrb[0].mxu0 %v550
          %v690 = vpop.f32.mrb[0].mxu0
          %v691 = vadd.f32 %v424, %v690
          %v692 = vpop.f32.mrb[0].mxu0
          %v693 = vpop.f32.mrb[0].mxu0
          %v694 = vadd.f32 %v424, %v693
          %v695 = vpop.f32.mrb[0].mxu0
          %696 = vmatprep.mubr.bf16.mxu0 0
          %697 = vmatmul.mubr.bf16.gmra.mrb[0].mxu0 %v553
          %v698 = vpop.f32.mrb[0].mxu0
          %v699 = vadd.f32 %v424, %v698
          %v700 = vpop.f32.mrb[0].mxu0
          %v701 = vpop.f32.mrb[0].mxu0
          %v702 = vadd.f32 %v424, %v701
          %v703 = vpop.f32.mrb[0].mxu0
          %704 = vmatprep.mubr.bf16.mxu0 0
          %705 = vmatmul.mubr.bf16.gmra.mrb[0].mxu0 %v556
          %v706 = vpop.f32.mrb[0].mxu0
          %v707 = vadd.f32 %v424, %v706
          %v708 = vpop.f32.mrb[0].mxu0
          %v709 = vpop.f32.mrb[0].mxu0
          %v710 = vadd.f32 %v424, %v709
          %v711 = vpop.f32.mrb[0].mxu0
          %712 = vmatprep.mubr.bf16.mxu0 0
          %713 = vmatmul.mubr.bf16.gmra.mrb[0].mxu0 %v559
          %v714 = vpop.f32.mrb[0].mxu0
          %v715 = vadd.f32 %v424, %v714
          %v716 = vpop.f32.mrb[0].mxu0
          %v717 = vpop.f32.mrb[0].mxu0
          %v718 = vadd.f32 %v424, %v717
          %v719 = vpop.f32.mrb[0].mxu0
          %720 = vmatprep.mubr.bf16.mxu0 0
          %721 = vmatmul.mubr.bf16.gmra.mrb[0].mxu0 %v562
          %v722 = vpop.f32.mrb[0].mxu0
          %v723 = vadd.f32 %v424, %v722
          %v724 = vpop.f32.mrb[0].mxu0
          %v725 = vpop.f32.mrb[0].mxu0
          %v726 = vadd.f32 %v424, %v725
          %v727 = vpop.f32.mrb[0].mxu0
          %728 = vdwg.mxu0
          %v729 = vmul.f32 %v603, 0.5
          %v730 = vmul.f32 %v606, 0.5
          %v731 = vmul.f32 %v611, 0.5
          %v732 = vmul.f32 %v614, 0.5
          %v733 = vmul.f32 %v619, 0.5
          %v734 = vmul.f32 %v622, 0.5
          %v735 = vmul.f32 %v627, 0.5
          %v736 = vmul.f32 %v630, 0.5
          %v737 = vmul.f32 %v635, 0.5
          %v738 = vmul.f32 %v638, 0.5
          %v739 = vmul.f32 %v643, 0.5
          %v740 = vmul.f32 %v646, 0.5
          %v741 = vmul.f32 %v651, 0.5
          %v742 = vmul.f32 %v654, 0.5
          %v743 = vmul.f32 %v659, 0.5
          %v744 = vmul.f32 %v662, 0.5
          %v745 = vmul.f32 %v667, 0.5
          %v746 = vmul.f32 %v670, 0.5
          %v747 = vmul.f32 %v675, 0.5
          %v748 = vmul.f32 %v678, 0.5
          %v749 = vmul.f32 %v683, 0.5
          %v750 = vmul.f32 %v686, 0.5
          %v751 = vmul.f32 %v691, 0.5
          %v752 = vmul.f32 %v694, 0.5
          %v753 = vmul.f32 %v699, 0.5
          %v754 = vmul.f32 %v702, 0.5
          %v755 = vmul.f32 %v707, 0.5
          %v756 = vmul.f32 %v710, 0.5
          %v757 = vmul.f32 %v715, 0.5
          %v758 = vmul.f32 %v718, 0.5
          %v759 = vmul.f32 %v723, 0.5
          %v760 = vmul.f32 %v726, 0.5
          %v761 = vmul.f32 %v603, 0.044715
          %v762 = vmul.f32 %v606, 0.044715
          %v763 = vmul.f32 %v611, 0.044715
          %v764 = vmul.f32 %v614, 0.044715
          %v765 = vmul.f32 %v619, 0.044715
          %v766 = vmul.f32 %v622, 0.044715
          %v767 = vmul.f32 %v627, 0.044715
          %v768 = vmul.f32 %v630, 0.044715
          %v769 = vmul.f32 %v635, 0.044715
          %v770 = vmul.f32 %v638, 0.044715
          %v771 = vmul.f32 %v643, 0.044715
          %v772 = vmul.f32 %v646, 0.044715
          %v773 = vmul.f32 %v651, 0.044715
          %v774 = vmul.f32 %v654, 0.044715
          %v775 = vmul.f32 %v659, 0.044715
          %v776 = vmul.f32 %v662, 0.044715
          %v777 = vmul.f32 %v667, 0.044715
          %v778 = vmul.f32 %v670, 0.044715
          %v779 = vmul.f32 %v675, 0.044715
          %v780 = vmul.f32 %v678, 0.044715
          %v781 = vmul.f32 %v683, 0.044715
          %v782 = vmul.f32 %v686, 0.044715
          %v783 = vmul.f32 %v691, 0.044715
          %v784 = vmul.f32 %v694, 0.044715
          %v785 = vmul.f32 %v699, 0.044715
          %v786 = vmul.f32 %v702, 0.044715
          %v787 = vmul.f32 %v707, 0.044715
          %v788 = vmul.f32 %v710, 0.044715
          %v789 = vmul.f32 %v715, 0.044715
          %v790 = vmul.f32 %v718, 0.044715
          %v791 = vmul.f32 %v723, 0.044715
          %v792 = vmul.f32 %v726, 0.044715
          %v793 = vmul.f32 %v761, %v603
          %v794 = vmul.f32 %v762, %v606
          %v795 = vmul.f32 %v763, %v611
          %v796 = vmul.f32 %v764, %v614
          %v797 = vmul.f32 %v765, %v619
          %v798 = vmul.f32 %v766, %v622
          %v799 = vmul.f32 %v767, %v627
          %v800 = vmul.f32 %v768, %v630
          %v801 = vmul.f32 %v769, %v635
          %v802 = vmul.f32 %v770, %v638
          %v803 = vmul.f32 %v771, %v643
          %v804 = vmul.f32 %v772, %v646
          %v805 = vmul.f32 %v773, %v651
          %v806 = vmul.f32 %v774, %v654
          %v807 = vmul.f32 %v775, %v659
          %v808 = vmul.f32 %v776, %v662
          %v809 = vmul.f32 %v777, %v667
          %v810 = vmul.f32 %v778, %v670
          %v811 = vmul.f32 %v779, %v675
          %v812 = vmul.f32 %v780, %v678
          %v813 = vmul.f32 %v781, %v683
          %v814 = vmul.f32 %v782, %v686
          %v815 = vmul.f32 %v783, %v691
          %v816 = vmul.f32 %v784, %v694
          %v817 = vmul.f32 %v785, %v699
          %v818 = vmul.f32 %v786, %v702
          %v819 = vmul.f32 %v787, %v707
          %v820 = vmul.f32 %v788, %v710
          %v821 = vmul.f32 %v789, %v715
          %v822 = vmul.f32 %v790, %v718
          %v823 = vmul.f32 %v791, %v723
          %v824 = vmul.f32 %v792, %v726
          %v825 = vmul.f32 %v793, %v603
          %v826 = vmul.f32 %v794, %v606
          %v827 = vmul.f32 %v795, %v611
          %v828 = vmul.f32 %v796, %v614
          %v829 = vmul.f32 %v797, %v619
          %v830 = vmul.f32 %v798, %v622
          %v831 = vmul.f32 %v799, %v627
          %v832 = vmul.f32 %v800, %v630
          %v833 = vmul.f32 %v801, %v635
          %v834 = vmul.f32 %v802, %v638
          %v835 = vmul.f32 %v803, %v643
          %v836 = vmul.f32 %v804, %v646
          %v837 = vmul.f32 %v805, %v651
          %v838 = vmul.f32 %v806, %v654
          %v839 = vmul.f32 %v807, %v659
          %v840 = vmul.f32 %v808, %v662
          %v841 = vmul.f32 %v809, %v667
          %v842 = vmul.f32 %v810, %v670
          %v843 = vmul.f32 %v811, %v675
          %v844 = vmul.f32 %v812, %v678
          %v845 = vmul.f32 %v813, %v683
          %v846 = vmul.f32 %v814, %v686
          %v847 = vmul.f32 %v815, %v691
          %v848 = vmul.f32 %v816, %v694
          %v849 = vmul.f32 %v817, %v699
          %v850 = vmul.f32 %v818, %v702
          %v851 = vmul.f32 %v819, %v707
          %v852 = vmul.f32 %v820, %v710
          %v853 = vmul.f32 %v821, %v715
          %v854 = vmul.f32 %v822, %v718
          %v855 = vmul.f32 %v823, %v723
          %v856 = vmul.f32 %v824, %v726
          %v857 = vadd.f32 %v603, %v825
          %v858 = vadd.f32 %v606, %v826
          %v859 = vadd.f32 %v611, %v827
          %v860 = vadd.f32 %v614, %v828
          %v861 = vadd.f32 %v619, %v829
          %v862 = vadd.f32 %v622, %v830
          %v863 = vadd.f32 %v627, %v831
          %v864 = vadd.f32 %v630, %v832
          %v865 = vadd.f32 %v635, %v833
          %v866 = vadd.f32 %v638, %v834
          %v867 = vadd.f32 %v643, %v835
          %v868 = vadd.f32 %v646, %v836
          %v869 = vadd.f32 %v651, %v837
          %v870 = vadd.f32 %v654, %v838
          %v871 = vadd.f32 %v659, %v839
          %v872 = vadd.f32 %v662, %v840
          %v873 = vadd.f32 %v667, %v841
          %v874 = vadd.f32 %v670, %v842
          %v875 = vadd.f32 %v675, %v843
          %v876 = vadd.f32 %v678, %v844
          %v877 = vadd.f32 %v683, %v845
          %v878 = vadd.f32 %v686, %v846
          %v879 = vadd.f32 %v691, %v847
          %v880 = vadd.f32 %v694, %v848
          %v881 = vadd.f32 %v699, %v849
          %v882 = vadd.f32 %v702, %v850
          %v883 = vadd.f32 %v707, %v851
          %v884 = vadd.f32 %v710, %v852
          %v885 = vadd.f32 %v715, %v853
          %v886 = vadd.f32 %v718, %v854
          %v887 = vadd.f32 %v723, %v855
          %v888 = vadd.f32 %v726, %v856
          %v889 = vmul.f32 %v857, 0.7978846
          %v890 = vmul.f32 %v858, 0.7978846
          %v891 = vmul.f32 %v859, 0.7978846
          %v892 = vmul.f32 %v860, 0.7978846
          %v893 = vmul.f32 %v861, 0.7978846
          %v894 = vmul.f32 %v862, 0.7978846
          %v895 = vmul.f32 %v863, 0.7978846
          %v896 = vmul.f32 %v864, 0.7978846
          %v897 = vmul.f32 %v865, 0.7978846
          %v898 = vmul.f32 %v866, 0.7978846
          %v899 = vmul.f32 %v867, 0.7978846
          %v900 = vmul.f32 %v868, 0.7978846
          %v901 = vmul.f32 %v869, 0.7978846
          %v902 = vmul.f32 %v870, 0.7978846
          %v903 = vmul.f32 %v871, 0.7978846
          %v904 = vmul.f32 %v872, 0.7978846
          %v905 = vmul.f32 %v873, 0.7978846
          %v906 = vmul.f32 %v874, 0.7978846
          %v907 = vmul.f32 %v875, 0.7978846
          %v908 = vmul.f32 %v876, 0.7978846
          %v909 = vmul.f32 %v877, 0.7978846
          %v910 = vmul.f32 %v878, 0.7978846
          %v911 = vmul.f32 %v879, 0.7978846
          %v912 = vmul.f32 %v880, 0.7978846
          %v913 = vmul.f32 %v881, 0.7978846
          %v914 = vmul.f32 %v882, 0.7978846
          %v915 = vmul.f32 %v883, 0.7978846
          %v916 = vmul.f32 %v884, 0.7978846
          %v917 = vmul.f32 %v885, 0.7978846
          %v918 = vmul.f32 %v886, 0.7978846
          %v919 = vmul.f32 %v887, 0.7978846
          %v920 = vmul.f32 %v888, 0.7978846
          %v921 = vtanh.pop %v889
          %v922 = vtanh.pop %v890
          %v923 = vtanh.pop %v891
          %v924 = vtanh.pop %v892
          %v925 = vtanh.pop %v893
          %v926 = vtanh.pop %v894
          %v927 = vtanh.pop %v895
          %v928 = vtanh.pop %v896
          %v929 = vtanh.pop %v897
          %v930 = vtanh.pop %v898
          %v931 = vtanh.pop %v899
          %v932 = vtanh.pop %v900
          %v933 = vtanh.pop %v901
          %v934 = vtanh.pop %v902
          %v935 = vtanh.pop %v903
          %v936 = vtanh.pop %v904
          %v937 = vtanh.pop %v905
          %v938 = vtanh.pop %v906
          %v939 = vtanh.pop %v907
          %v940 = vtanh.pop %v908
          %v941 = vtanh.pop %v909
          %v942 = vtanh.pop %v910
          %v943 = vtanh.pop %v911
          %v944 = vtanh.pop %v912
          %v945 = vtanh.pop %v913
          %v946 = vtanh.pop %v914
          %v947 = vtanh.pop %v915
          %v948 = vtanh.pop %v916
          %v949 = vtanh.pop %v917
          %v950 = vtanh.pop %v918
          %v951 = vtanh.pop %v919
          %v952 = vtanh.pop %v920
          %v953 = vadd.f32 %v921, 1.0
          %v954 = vadd.f32 %v922, 1.0
          %v955 = vadd.f32 %v923, 1.0
          %v956 = vadd.f32 %v924, 1.0
          %v957 = vadd.f32 %v925, 1.0
          %v958 = vadd.f32 %v926, 1.0
          %v959 = vadd.f32 %v927, 1.0
          %v960 = vadd.f32 %v928, 1.0
          %v961 = vadd.f32 %v929, 1.0
          %v962 = vadd.f32 %v930, 1.0
          %v963 = vadd.f32 %v931, 1.0
          %v964 = vadd.f32 %v932, 1.0
          %v965 = vadd.f32 %v933, 1.0
          %v966 = vadd.f32 %v934, 1.0
          %v967 = vadd.f32 %v935, 1.0
          %v968 = vadd.f32 %v936, 1.0
          %v969 = vadd.f32 %v937, 1.0
          %v970 = vadd.f32 %v938, 1.0
          %v971 = vadd.f32 %v939, 1.0
          %v972 = vadd.f32 %v940, 1.0
          %v973 = vadd.f32 %v941, 1.0
          %v974 = vadd.f32 %v942, 1.0
          %v975 = vadd.f32 %v943, 1.0
          %v976 = vadd.f32 %v944, 1.0
          %v977 = vadd.f32 %v945, 1.0
          %v978 = vadd.f32 %v946, 1.0
          %v979 = vadd.f32 %v947, 1.0
          %v980 = vadd.f32 %v948, 1.0
          %v981 = vadd.f32 %v949, 1.0
          %v982 = vadd.f32 %v950, 1.0
          %v983 = vadd.f32 %v951, 1.0
          %v984 = vadd.f32 %v952, 1.0
          %v985 = vmul.f32 %v729, %v953
          %v986 = vmul.f32 %v730, %v954
          %v987 = vmul.f32 %v731, %v955
          %v988 = vmul.f32 %v732, %v956
          %v989 = vmul.f32 %v733, %v957
          %v990 = vmul.f32 %v734, %v958
          %v991 = vmul.f32 %v735, %v959
          %v992 = vmul.f32 %v736, %v960
          %v993 = vmul.f32 %v737, %v961
          %v994 = vmul.f32 %v738, %v962
          %v995 = vmul.f32 %v739, %v963
          %v996 = vmul.f32 %v740, %v964
          %v997 = vmul.f32 %v741, %v965
          %v998 = vmul.f32 %v742, %v966
          %v999 = vmul.f32 %v743, %v967
          %v1000 = vmul.f32 %v744, %v968
          %v1001 = vmul.f32 %v745, %v969
          %v1002 = vmul.f32 %v746, %v970
          %v1003 = vmul.f32 %v747, %v971
          %v1004 = vmul.f32 %v748, %v972
          %v1005 = vmul.f32 %v749, %v973
          %v1006 = vmul.f32 %v750, %v974
          %v1007 = vmul.f32 %v751, %v975
          %v1008 = vmul.f32 %v752, %v976
          %v1009 = vmul.f32 %v753, %v977
          %v1010 = vmul.f32 %v754, %v978
          %v1011 = vmul.f32 %v755, %v979
          %v1012 = vmul.f32 %v756, %v980
          %v1013 = vmul.f32 %v757, %v981
          %v1014 = vmul.f32 %v758, %v982
          %v1015 = vmul.f32 %v759, %v983
          %v1016 = vmul.f32 %v760, %v984
          %v1017 = vlaneseq
          %v1018 = vshrl.u32 %v1017, 7
          %v1019 = vadd.s32 %v1018, 8
          %v1020 = vstv %s379
          %v1021 = vadd.s32 %v1020, %v1018
          %v1022 = vadd.s32 %v1020, %v1019
          %v1023 = vstv %s378
          %vm1024 = vcmp.lt.s32.totalorder %v1021, %v1023
          %vm1025 = vcmp.lt.s32.totalorder %v1022, %v1023
          %v1026 = vsel %vm1024, 1, 0
          %v1027 = vsel %vm1025, 1, 0
          %vm1028 = vcmp.eq.s32.totalorder %v1026, 1
          %vm1029 = vcmp.eq.s32.totalorder %v1027, 1
          %v1030 = vsel %vm1028, %v985, -1e+30
          %v1031 = vsel %vm1029, %v986, -1e+30
          %v1032 = vsel %vm1028, %v987, -1e+30
          %v1033 = vsel %vm1029, %v988, -1e+30
          %v1034 = vsel %vm1028, %v989, -1e+30
          %v1035 = vsel %vm1029, %v990, -1e+30
          %v1036 = vsel %vm1028, %v991, -1e+30
          %v1037 = vsel %vm1029, %v992, -1e+30
          %v1038 = vsel %vm1028, %v993, -1e+30
          %v1039 = vsel %vm1029, %v994, -1e+30
          %v1040 = vsel %vm1028, %v995, -1e+30
          %v1041 = vsel %vm1029, %v996, -1e+30
          %v1042 = vsel %vm1028, %v997, -1e+30
          %v1043 = vsel %vm1029, %v998, -1e+30
          %v1044 = vsel %vm1028, %v999, -1e+30
          %v1045 = vsel %vm1029, %v1000, -1e+30
          %v1046 = vsel %vm1028, %v1001, -1e+30
          %v1047 = vsel %vm1029, %v1002, -1e+30
          %v1048 = vsel %vm1028, %v1003, -1e+30
          %v1049 = vsel %vm1029, %v1004, -1e+30
          %v1050 = vsel %vm1028, %v1005, -1e+30
          %v1051 = vsel %vm1029, %v1006, -1e+30
          %v1052 = vsel %vm1028, %v1007, -1e+30
          %v1053 = vsel %vm1029, %v1008, -1e+30
          %v1054 = vsel %vm1028, %v1009, -1e+30
          %v1055 = vsel %vm1029, %v1010, -1e+30
          %v1056 = vsel %vm1028, %v1011, -1e+30
          %v1057 = vsel %vm1029, %v1012, -1e+30
          %v1058 = vsel %vm1028, %v1013, -1e+30
          %v1059 = vsel %vm1029, %v1014, -1e+30
          %v1060 = vsel %vm1028, %v1015, -1e+30
          %v1061 = vsel %vm1029, %v1016, -1e+30
          %v1062 = vld [vmem:[#allocation2] sm:$0xff]
          %v1063 = vld [vmem:[#allocation2 + $0x8] sm:$0xff]
          %v1064 = vmax.f32 %v1030, %v1031
          %v1065 = vrot.slane %v1064, 4
          %v1066 = vmax.f32 %v1064, %v1065
          %v1067 = vrot.slane %v1066, 2
          %v1068 = vmax.f32 %v1066, %v1067
          %v1069 = vrot.slane %v1068, 1
          %v1070 = vmax.f32 %v1068, %v1069
          %v1071 = vmax.f32 %v1032, %v1033
          %v1072 = vrot.slane %v1071, 4
          %v1073 = vmax.f32 %v1071, %v1072
          %v1074 = vrot.slane %v1073, 2
          %v1075 = vmax.f32 %v1073, %v1074
          %v1076 = vrot.slane %v1075, 1
          %v1077 = vmax.f32 %v1075, %v1076
          %v1078 = vmax.f32 %v1034, %v1035
          %v1079 = vrot.slane %v1078, 4
          %v1080 = vmax.f32 %v1078, %v1079
          %v1081 = vrot.slane %v1080, 2
          %v1082 = vmax.f32 %v1080, %v1081
          %v1083 = vrot.slane %v1082, 1
          %v1084 = vmax.f32 %v1082, %v1083
          %v1085 = vmax.f32 %v1036, %v1037
          %v1086 = vrot.slane %v1085, 4
          %v1087 = vmax.f32 %v1085, %v1086
          %v1088 = vrot.slane %v1087, 2
          %v1089 = vmax.f32 %v1087, %v1088
          %v1090 = vrot.slane %v1089, 1
          %v1091 = vmax.f32 %v1089, %v1090
          %v1092 = vmax.f32 %v1038, %v1039
          %v1093 = vrot.slane %v1092, 4
          %v1094 = vmax.f32 %v1092, %v1093
          %v1095 = vrot.slane %v1094, 2
          %v1096 = vmax.f32 %v1094, %v1095
          %v1097 = vrot.slane %v1096, 1
          %v1098 = vmax.f32 %v1096, %v1097
          %v1099 = vmax.f32 %v1040, %v1041
          %v1100 = vrot.slane %v1099, 4
          %v1101 = vmax.f32 %v1099, %v1100
          %v1102 = vrot.slane %v1101, 2
          %v1103 = vmax.f32 %v1101, %v1102
          %v1104 = vrot.slane %v1103, 1
          %v1105 = vmax.f32 %v1103, %v1104
          %v1106 = vmax.f32 %v1042, %v1043
          %v1107 = vrot.slane %v1106, 4
          %v1108 = vmax.f32 %v1106, %v1107
          %v1109 = vrot.slane %v1108, 2
          %v1110 = vmax.f32 %v1108, %v1109
          %v1111 = vrot.slane %v1110, 1
          %v1112 = vmax.f32 %v1110, %v1111
          %v1113 = vmax.f32 %v1044, %v1045
          %v1114 = vrot.slane %v1113, 4
          %v1115 = vmax.f32 %v1113, %v1114
          %v1116 = vrot.slane %v1115, 2
          %v1117 = vmax.f32 %v1115, %v1116
          %v1118 = vrot.slane %v1117, 1
          %v1119 = vmax.f32 %v1117, %v1118
          %v1120 = vmax.f32 %v1046, %v1047
          %v1121 = vrot.slane %v1120, 4
          %v1122 = vmax.f32 %v1120, %v1121
          %v1123 = vrot.slane %v1122, 2
          %v1124 = vmax.f32 %v1122, %v1123
          %v1125 = vrot.slane %v1124, 1
          %v1126 = vmax.f32 %v1124, %v1125
          %v1127 = vmax.f32 %v1048, %v1049
          %v1128 = vrot.slane %v1127, 4
          %v1129 = vmax.f32 %v1127, %v1128
          %v1130 = vrot.slane %v1129, 2
          %v1131 = vmax.f32 %v1129, %v1130
          %v1132 = vrot.slane %v1131, 1
          %v1133 = vmax.f32 %v1131, %v1132
          %v1134 = vmax.f32 %v1050, %v1051
          %v1135 = vrot.slane %v1134, 4
          %v1136 = vmax.f32 %v1134, %v1135
          %v1137 = vrot.slane %v1136, 2
          %v1138 = vmax.f32 %v1136, %v1137
          %v1139 = vrot.slane %v1138, 1
          %v1140 = vmax.f32 %v1138, %v1139
          %v1141 = vmax.f32 %v1052, %v1053
          %v1142 = vrot.slane %v1141, 4
          %v1143 = vmax.f32 %v1141, %v1142
          %v1144 = vrot.slane %v1143, 2
          %v1145 = vmax.f32 %v1143, %v1144
          %v1146 = vrot.slane %v1145, 1
          %v1147 = vmax.f32 %v1145, %v1146
          %v1148 = vmax.f32 %v1054, %v1055
          %v1149 = vrot.slane %v1148, 4
          %v1150 = vmax.f32 %v1148, %v1149
          %v1151 = vrot.slane %v1150, 2
          %v1152 = vmax.f32 %v1150, %v1151
          %v1153 = vrot.slane %v1152, 1
          %v1154 = vmax.f32 %v1152, %v1153
          %v1155 = vmax.f32 %v1056, %v1057
          %v1156 = vrot.slane %v1155, 4
          %v1157 = vmax.f32 %v1155, %v1156
          %v1158 = vrot.slane %v1157, 2
          %v1159 = vmax.f32 %v1157, %v1158
          %v1160 = vrot.slane %v1159, 1
          %v1161 = vmax.f32 %v1159, %v1160
          %v1162 = vmax.f32 %v1058, %v1059
          %v1163 = vrot.slane %v1162, 4
          %v1164 = vmax.f32 %v1162, %v1163
          %v1165 = vrot.slane %v1164, 2
          %v1166 = vmax.f32 %v1164, %v1165
          %v1167 = vrot.slane %v1166, 1
          %v1168 = vmax.f32 %v1166, %v1167
          %v1169 = vmax.f32 %v1060, %v1061
          %v1170 = vrot.slane %v1169, 4
          %v1171 = vmax.f32 %v1169, %v1170
          %v1172 = vrot.slane %v1171, 2
          %v1173 = vmax.f32 %v1171, %v1172
          %v1174 = vrot.slane %v1173, 1
          %v1175 = vmax.f32 %v1173, %v1174
          %vm1192 = vcmask 1041409
          %v1193 = vsel %vm1192, %v1077, %v1070
          %vm1194 = vcmask 1042434
          %v1195 = vsel %vm1194, %v1084, %v1193
          %vm1196 = vcmask 1043459
          %v1197 = vsel %vm1196, %v1091, %v1195
          %vm1198 = vcmask 1044484
          %v1199 = vsel %vm1198, %v1098, %v1197
          %vm1200 = vcmask 1045509
          %v1201 = vsel %vm1200, %v1105, %v1199
          %vm1202 = vcmask 1046534
          %v1203 = vsel %vm1202, %v1112, %v1201
          %vm1204 = vcmask 1047559
          %v1205 = vsel %vm1204, %v1119, %v1203
          %v1206 = vsel %vm1192, %v1133, %v1126
          %v1207 = vsel %vm1194, %v1140, %v1206
          %v1208 = vsel %vm1196, %v1147, %v1207
          %v1209 = vsel %vm1198, %v1154, %v1208
          %v1210 = vsel %vm1200, %v1161, %v1209
          %v1211 = vsel %vm1202, %v1168, %v1210
          %v1212 = vsel %vm1204, %v1175, %v1211
          %v1215 = vmax.f32 %v1062, %v1205
          %v1216 = vmax.f32 %v1063, %v1212
          %1217 = vst [vmem:[#allocation2] sm:$0xff] %v1215
          %1218 = vst [vmem:[#allocation2 + $0x8] sm:$0xff] %v1216
        $region56: #{tpu_custom_call.1} parent=39 // pred_fallthru
          _
        // Predicated region
        $region57: #{tpu_custom_call.1} parent=39 // pred_check
          %p1219 = pneg %p372
        $region58: #{tpu_custom_call.1} parent=39 // pred_check_branch
          %1221 = sbr.rel (%p1219) target = $region60
        $region59: #{tpu_custom_call.1} parent=39 // pred_region
          %v1222 = vld [vmem:[#allocation2] sm:$0xff]
          %v1223 = vld [vmem:[#allocation2 + $0x8] sm:$0xff]
          %v1224 = vpack.c.bf16 %v1223, %v1222
          %v1225 = vld [vmem:[%s314] sm:$0xf]
          %v1226 = vld [vmem:[%s314 + $0x4] sm:$0xf]
          %v1227 = vld [vmem:[%s314 + $0x8] sm:$0xf]
          %v1228 = vld [vmem:[%s314 + $0xc] sm:$0xf]
          %v1229 = vld [vmem:[%s314 + $0x10] sm:$0xf]
          %v1230 = vld [vmem:[%s314 + $0x14] sm:$0xf]
          %v1231 = vld [vmem:[%s314 + $0x18] sm:$0xf]
          %v1232 = vld [vmem:[%s314 + $0x1c] sm:$0xf]
          %v1233 = vld [vmem:[%s314 + $0x20] sm:$0xf]
          %v1234 = vld [vmem:[%s314 + $0x24] sm:$0xf]
          %v1235 = vld [vmem:[%s314 + $0x28] sm:$0xf]
          %v1236 = vld [vmem:[%s314 + $0x2c] sm:$0xf]
          %v1237 = vld [vmem:[%s314 + $0x30] sm:$0xf]
          %v1238 = vld [vmem:[%s314 + $0x34] sm:$0xf]
          %v1239 = vld [vmem:[%s314 + $0x38] sm:$0xf]
          %v1240 = vld [vmem:[%s314 + $0x3c] sm:$0xf]
          %v1241 = vld [vmem:[%s369] sm:$0x1]
          %v1243 = vlaneseq
          %v1244 = vshrl.u32 %v1243, 7
          %v1245 = vsub.s32 0, %v1244
          %v1246 = vrot.slane %v1241, %v1245
          %v1264 = vunpack.c.l.b16 %v1225
          %v1265 = vunpack.c.l.b16 %v1226
          %v1266 = vunpack.c.l.b16 %v1227
          %v1267 = vunpack.c.l.b16 %v1228
          %v1268 = vunpack.c.l.b16 %v1229
          %v1269 = vunpack.c.l.b16 %v1230
          %v1270 = vunpack.c.l.b16 %v1231
          %v1271 = vunpack.c.l.b16 %v1232
          %v1272 = vunpack.c.l.b16 %v1233
          %v1273 = vunpack.c.l.b16 %v1234
          %v1274 = vunpack.c.l.b16 %v1235
          %v1275 = vunpack.c.l.b16 %v1236
          %v1276 = vunpack.c.l.b16 %v1237
          %v1277 = vunpack.c.l.b16 %v1238
          %v1278 = vunpack.c.l.b16 %v1239
          %v1279 = vunpack.c.l.b16 %v1240
          %v1280 = vpack.c.b16 %v1265, %v1264
          %v1281 = vpack.c.b16 %v1267, %v1266
          %v1282 = vpack.c.b16 %v1269, %v1268
          %v1283 = vpack.c.b16 %v1271, %v1270
          %v1284 = vpack.c.b16 %v1273, %v1272
          %v1285 = vpack.c.b16 %v1275, %v1274
          %v1286 = vpack.c.b16 %v1277, %v1276
          %v1287 = vpack.c.b16 %v1279, %v1278
          %1296 = vmatprep.subr.bf16.mxu0 0
          %1297 = vmatpush1.bf16.msra.mxu0 %v1280
          %1298 = vmatprep.subr.bf16.mxu0 0
          %1299 = vmatpush1.bf16.msra.mxu0 %v1281
          %1300 = vmatprep.subr.bf16.mxu0 0
          %1301 = vmatpush1.bf16.msra.mxu0 %v1282
          %1302 = vmatprep.subr.bf16.mxu0 0
          %1303 = vmatpush1.bf16.msra.mxu0 %v1283
          %1304 = vmatprep.subr.bf16.mxu0 0
          %1305 = vmatpush1.bf16.msra.mxu0 %v1284
          %1306 = vmatprep.subr.bf16.mxu0 0
          %1307 = vmatpush1.bf16.msra.mxu0 %v1285
          %1308 = vmatprep.subr.bf16.mxu0 0
          %1309 = vmatpush1.bf16.msra.mxu0 %v1286
          %1310 = vmatprep.subr.bf16.mxu0 0
          %1311 = vmatpush1.bf16.msra.mxu0 %v1287
          %1312 = vmatprep.subr.bf16.mxu0 0
          %1313 = vmatpush1.bf16.msra.mxu0 0
          %1314 = vmatprep.subr.bf16.mxu0 0
          %1315 = vmatpush1.bf16.msra.mxu0 0
          %1316 = vmatprep.subr.bf16.mxu0 0
          %1317 = vmatpush1.bf16.msra.mxu0 0
          %1318 = vmatprep.subr.bf16.mxu0 0
          %1319 = vmatpush1.bf16.msra.mxu0 0
          %1320 = vmatprep.subr.bf16.mxu0 0
          %1321 = vmatpush1.bf16.msra.mxu0 0
          %1322 = vmatprep.subr.bf16.mxu0 0
          %1323 = vmatpush1.bf16.msra.mxu0 0
          %1324 = vmatprep.subr.bf16.mxu0 0
          %1325 = vmatpush1.bf16.msra.mxu0 0
          %1326 = vmatprep.subr.bf16.mxu0 0
          %1327 = vmatpush1.bf16.msra.mxu0 0
          %1328 = vmatprep.mubr.bf16.mxu0 0
          %1329 = vmatmul.mubr.bf16.gmra.mrb[0].mxu0 %v1224
          %v1330 = vpop.f32.mrb[0].mxu0
          %v1331 = vadd.f32 %v1246, %v1330
          %v1332 = vpop.f32.mrb[0].mxu0
          %v1333 = vpop.f32.mrb[0].mxu0
          %v1334 = vadd.f32 %v1246, %v1333
          %v1335 = vpop.f32.mrb[0].mxu0
          %1336 = vdwg.mxu0
          %v1337 = vpack.c.bf16 %v1334, %v1331
          %v1339 = vunpack.c.l.b16 %v1337
          %v1340 = vunpack.c.h.b16 %v1337
          %v1341 = vpack.c.b16 %v1339, %v1339
          %v1342 = vpack.c.b16 %v1340, %v1340
          %1345 = vst [vmem:[%s356] sm:$0xf] %v1341
          %1346 = vst [vmem:[%s356 + $0x4] sm:$0xf] %v1342
        $region60: #{tpu_custom_call.1} parent=39 // pred_fallthru
          _
        %s1347 = sand.u32 %s195, 1
        %s1348 = scalar_lea.sflag [#allocation7], %s1347
        %s1349 = sand.u32 %s195, 1
        %s1350 = smul.addr %s1349, 8
        %s1351 = scalar_lea.vmem [#allocation10], %s1350
        // Predicated region
        $region61: #{tpu_custom_call.1} parent=39 // pred_check
          %p1352 = pneg %p205
        $region62: #{tpu_custom_call.1} parent=39 // pred_check_branch
          %1354 = sbr.rel (%p1352) target = $region64
        $region63: #{tpu_custom_call.1} parent=39 // pred_region
          %s1355 = smul.u32 2, %s38
          %s1357 = ssub.s32 128, 128
          %1358 = vsyncadd %s1348, %s1357
          %s1359 = smul.addr %s1355, 2
          %s1360 = sadd.s32 %s37, %s1359
          %s1361 = smul.addr %s1360, 64
          %s1362 = scalar_lea.hbm %s6, %s1361
          %s1363 = sshll.u32 %s1351, 4
          %s1364 = int_to_ptr.vmem [resolvable:$true] %s1363
          %1369 = dma.vmem_to_hbm [thread:$0]  %s1364, 128, %s1362, %s1348, 64, 128, 4
        $region64: #{tpu_custom_call.1} parent=39 // pred_fallthru
          _
      $region40: #{tpu_custom_call.1} parent=5 // pred_fallthru
        _
      %p1370 = scmp.le.s32.totalorder 2, %s27
      // Predicated region
      $region65: #{tpu_custom_call.1} parent=5 // pred_check
        %p1371 = pneg %p1370
      $region66: #{tpu_custom_call.1} parent=5 // pred_check_branch
        %1373 = sbr.rel (%p1371) target = $region68
      $region67: #{tpu_custom_call.1} parent=5 // pred_region
        %s1374 = ssub.s32 %s27, 2
        // Predicated region
        $region69: #{tpu_custom_call.1} parent=67 // pred_check
          %p1375 = pneg %p211
        $region70: #{tpu_custom_call.1} parent=67 // pred_check_branch
          %1377 = sbr.rel (%p1375) target = $region72
        $region71: #{tpu_custom_call.1} parent=67 // pred_region
          %s1378 = sand.u32 %s196, 1
          %s1379 = scalar_lea.sflag [#allocation7], %s1378
          %s1380 = sand.u32 %s196, 1
          %s1381 = smul.addr %s1380, 8
          %s1382 = scalar_lea.vmem [#allocation10], %s1381
          %1383 = dma.done %s1379, 128
        $region72: #{tpu_custom_call.1} parent=67 // pred_fallthru
          _
      $region68: #{tpu_custom_call.1} parent=5 // pred_fallthru
        _
    $region6: #{tpu_custom_call.1} parent=1 // loop_footer
      %s31 = sadd.s32 1, %s27
    $region7: #{tpu_custom_call.1} parent=1 // loop_footer_branch
      %26 = sbr.rel target = $region3
    $region8: #{tpu_custom_call.1} parent=1 // loop_exit
      _
    %1384 = vsyncpa [#allocation6], 1
    %s1385 = scalar_lea.sflag [#allocation6], 1
    %1386 = vsyncpa %s1385, 1
    %1387 = vsyncpa [#allocation9], 1
    %s1388 = scalar_lea.sflag [#allocation9], 1
    %1389 = vsyncpa %s1388, 1
    %1390 = vsyncpa [#allocation7], 1
    %s1391 = scalar_lea.sflag [#allocation7], 1
    %1392 = vsyncpa %s1391, 1

</llo_original>
